<compile_context>
chip_gen: v7x
topology: tpu7x:2x2x1
jax: 0.10.0
libtpu: 0.0.40
codegen_flags: <defaults>
</compile_context>

<pallas_src>
import functools

import jax
import jax.numpy as jnp
from jax.experimental import pallas as pl
from jax.experimental.pallas import tpu as pltpu


def _patch_split_kernel(x_ref, o_ref, *, patch, wp, channels, rows_per_block,
                        per_channel_store):
    """One grid step = a band of `rows_per_block` patch rows of one image.

    x_ref: (1, C, rb*p, W)        VMEM block.
    o_ref: (1, rb*wp, C*p*p)      VMEM block.
    """
    p = patch
    pp = p * p
    rb = rows_per_block

    def row_piece(c, r):
        # Sublane-dense (p, W) slab load — no 1-row masked loads.
        slab = x_ref[0, c, r * p:(r + 1) * p, :]          # [ph, j*p + pw]
        y = slab.reshape(p, wp, p)                        # [ph, j, pw]
        y = jnp.transpose(y, (1, 0, 2))                   # [j, ph, pw]
        return y.reshape(wp, pp)                          # [j, ph*p + pw]

    for c in range(channels):
        if per_channel_store:
            # wp is not 8-aligned: assemble the small per-channel band once and
            # issue a single sublane-dense store over the full row extent.
            rows = [row_piece(c, r) for r in range(rb)]
            band = rows[0] if rb == 1 else jnp.concatenate(rows, axis=0)
            o_ref[0, :, c * pp:(c + 1) * pp] = band       # (rb*wp, p*p)
        else:
            # Stream each (wp, p*p) piece straight into the output block so at
            # most one small piece is live at a time (no vreg-spill build-up).
            for r in range(rb):
                o_ref[0, r * wp:(r + 1) * wp, c * pp:(c + 1) * pp] = \
                    row_piece(c, r)


def _vmem_capacity_bytes():
    """Physical VMEM of the current chip, with a conservative fallback."""
    try:
        return int(pltpu.get_tpu_info().vmem_capacity_bytes)
    except Exception:
        return 64 << 20   # v7x per-TensorCore VMEM (smallest of the fleet)


def _choose_rows_per_block(hp, wp, p, channels, itemsize, batch,
                           max_block_bytes):
    """Pick how many patch rows to band per grid step.

    Constraints: rb divides hp; block second-to-last dims (rb*p input, rb*wp
    output) are multiples of 8 or equal to the full dims; the per-step traced
    op count and VMEM block size stay bounded. Prefers the smallest rb that
    moves >= ~4 MiB per step while keeping >= 4 parallel grid steps (so both
    v7x TensorCores get work); otherwise the largest rb that keeps >= 4 steps;
    otherwise the largest admissible rb.
    """
    H, N, W = hp * p, hp * wp, wp * p
    valid = []
    for rb in range(1, hp + 1):
        if hp % rb:
            continue
        r_in, r_out = rb * p, rb * wp
        if (r_in == H or r_in % 8 == 0) and (r_out == N or r_out % 8 == 0):
            valid.append(rb)
    # rb == hp is always valid (full-extent blocks), so `valid` is non-empty.

    bytes_of = lambda rb: channels * rb * p * W * itemsize
    ops_of = lambda rb: 6 * channels * rb
    steps_of = lambda rb: batch * (hp // rb)

    target_bytes = 4 << 20      # mem-bound tiling sweet spot (~85% HBM roofline)
    min_steps = 4               # keep work for both v7x TensorCores
    max_unrolled = 4096         # bound traced ops per grid step

    cands = [rb for rb in valid
             if ops_of(rb) <= max_unrolled and bytes_of(rb) <= max_block_bytes]
    if not cands:
        cands = [valid[0]]

    for rb in cands:            # smallest rb hitting the byte target w/ parallelism
        if bytes_of(rb) >= target_bytes and steps_of(rb) >= min_steps:
            return rb
    par = [rb for rb in cands if steps_of(rb) >= min_steps]
    if par:
        return par[-1]          # biggest band that still leaves enough steps
    return cands[-1]            # tiny problem: fewest steps wins


def patch_splitter(x, patch_size):
    """Pallas equivalent of PatchSplitter(patch_size)(x) for NCHW input."""
    B, C, H, W = x.shape
    p = patch_size
    assert H % p == 0 and W % p == 0, "spatial dims must be divisible by patch"
    hp, wp = H // p, W // p
    n_patches = hp * wp
    d = C * p * p
    pp = p * p
    itemsize = jnp.dtype(x.dtype).itemsize

    vmem_cap = _vmem_capacity_bytes()
    headroom = 8 << 20          # leave room for Mosaic internals / relayout tmp
    max_block_bytes = max((vmem_cap - headroom) // 6, 1 << 20)

    rb = _choose_rows_per_block(hp, wp, p, C, itemsize, B, max_block_bytes)
    grid = (B, hp // rb)
    block_in = (1, C, rb * p, W)           # row band of one image
    block_out = (1, rb * wp, d)            # the rb*wp patches of that band
    block_bytes = C * rb * p * W * itemsize

    # Store strategy: stream per-(r, c) pieces when their sublane offsets are
    # 8-aligned; otherwise assemble a per-channel band (only if it is small
    # enough to stay near the register file) and store it sublane-dense.
    per_channel_store = (wp % 8 != 0) and (rb * wp * pp * itemsize <= (256 << 10))

    kernel = functools.partial(
        _patch_split_kernel, patch=p, wp=wp, channels=C, rows_per_block=rb,
        per_channel_store=per_channel_store)

    # VMEM budget: in-block + out-block are the same size; double-buffered ->
    # ~4x block_bytes (+ slack). Only raise the scoped limit above the default
    # when needed, and always leave headroom below physical VMEM.
    cp_kwargs = dict(dimension_semantics=("parallel", "parallel"))
    want = 4 * block_bytes + (4 << 20)
    if want > (16 << 20):
        cp_kwargs["vmem_limit_bytes"] = int(min(want, vmem_cap - headroom))

    return pl.pallas_call(
        kernel,
        out_shape=jax.ShapeDtypeStruct((B, n_patches, d), x.dtype),
        grid=grid,
        in_specs=[pl.BlockSpec(block_in, lambda b, i: (b, 0, i, 0))],
        out_specs=pl.BlockSpec(block_out, lambda b, i: (b, i, 0)),
        compiler_params=pltpu.CompilerParams(**cp_kwargs),
    )(x)


def _reference(x, patch_size):
    """Pure-JAX reference replicating the PyTorch forward exactly."""
    B, C, H, W = x.shape
    p = patch_size
    y = x.reshape(B, C, H // p, p, W // p, p)
    y = jnp.transpose(y, (0, 2, 4, 1, 3, 5))
    return y.reshape(B, -1, C * p * p)


if __name__ == "__main__":
    # Small deterministic example consistent with the module's forward:
    # B=2, C=4, H=W=16, patch_size=8 -> output (2, 4, 256).
    key = jax.random.PRNGKey(0)
    B, C, H, W = 2, 4, 16, 16
    patch_size = 8
    x = jax.random.normal(key, (B, C, H, W), dtype=jnp.float32)

    out = patch_splitter(x, patch_size)
    out = jax.block_until_ready(out)

    ref = _reference(x, patch_size)
    assert out.shape == (B, (H // patch_size) * (W // patch_size),
                         C * patch_size * patch_size)
    assert out.dtype == x.dtype
    assert bool(jnp.array_equal(out, ref))

    print("KERNEL_OK")
</pallas_src>

<mosaic_0001>
module attributes {stable_mosaic.version = 11 : i64} {
  func.func @_patch_split_kernel(%arg0: i32, %arg1: i32, %arg2: memref<1x4x16x16xf32, #tpu.memory_space<vmem>>, %arg3: memref<1x4x256xf32, #tpu.memory_space<vmem>>) attributes {dimension_semantics = [#tpu.dimension_semantics<parallel>, #tpu.dimension_semantics<parallel>], iteration_bounds = array<i64: 2, 1>, scalar_prefetch = 0 : i64, scratch_operands = 0 : i64, tpu.core_type = #tpu.core_type<tc>, window_params = [{transform_indices = @transform_0, window_bounds = array<i64: 1, 4, 16, 16>}, {transform_indices = @transform_1, window_bounds = array<i64: 1, 4, 256>}]} {
    %c0 = arith.constant 0 : index
    %c0_0 = arith.constant 0 : index
    %c0_1 = arith.constant 0 : index
    %c0_2 = arith.constant 0 : index
    %0 = vector.load %arg2[%c0, %c0_0, %c0_1, %c0_2] : memref<1x4x16x16xf32, #tpu.memory_space<vmem>>, vector<1x1x8x16xf32>
    %1 = vector.shape_cast %0 : vector<1x1x8x16xf32> to vector<8x16xf32>
    %2 = vector.shape_cast %1 : vector<8x16xf32> to vector<8x2x8xf32>
    %3 = tpu.transpose %2, [1, 0, 2] : vector<8x2x8xf32> -> vector<2x8x8xf32>
    %4 = vector.shape_cast %3 : vector<2x8x8xf32> to vector<2x64xf32>
    %c0_3 = arith.constant 0 : index
    %c0_4 = arith.constant 0 : index
    %c8 = arith.constant 8 : index
    %c0_5 = arith.constant 0 : index
    %5 = vector.load %arg2[%c0_3, %c0_4, %c8, %c0_5] : memref<1x4x16x16xf32, #tpu.memory_space<vmem>>, vector<1x1x8x16xf32>
    %6 = vector.shape_cast %5 : vector<1x1x8x16xf32> to vector<8x16xf32>
    %7 = vector.shape_cast %6 : vector<8x16xf32> to vector<8x2x8xf32>
    %8 = tpu.transpose %7, [1, 0, 2] : vector<8x2x8xf32> -> vector<2x8x8xf32>
    %9 = vector.shape_cast %8 : vector<2x8x8xf32> to vector<2x64xf32>
    %10 = tpu.concatenate %4, %9 in 0 : vector<2x64xf32>, vector<2x64xf32> -> vector<4x64xf32>
    %c0_6 = arith.constant 0 : index
    %c0_7 = arith.constant 0 : index
    %c0_8 = arith.constant 0 : index
    %11 = vector.load %arg3[%c0_6, %c0_7, %c0_8] : memref<1x4x256xf32, #tpu.memory_space<vmem>>, vector<1x4x64xf32>
    %12 = vector.shape_cast %11 : vector<1x4x64xf32> to vector<4x64xf32>
    %13 = vector.shape_cast %10 : vector<4x64xf32> to vector<1x4x64xf32>
    tpu.vector_store %arg3[%c0_6, %c0_7, %c0_8], %13 {strides = array<i32>} : memref<1x4x256xf32, #tpu.memory_space<vmem>>, vector<1x4x64xf32>,
    %c0_9 = arith.constant 0 : index
    %c1 = arith.constant 1 : index
    %c0_10 = arith.constant 0 : index
    %c0_11 = arith.constant 0 : index
    %14 = vector.load %arg2[%c0_9, %c1, %c0_10, %c0_11] : memref<1x4x16x16xf32, #tpu.memory_space<vmem>>, vector<1x1x8x16xf32>
    %15 = vector.shape_cast %14 : vector<1x1x8x16xf32> to vector<8x16xf32>
    %16 = vector.shape_cast %15 : vector<8x16xf32> to vector<8x2x8xf32>
    %17 = tpu.transpose %16, [1, 0, 2] : vector<8x2x8xf32> -> vector<2x8x8xf32>
    %18 = vector.shape_cast %17 : vector<2x8x8xf32> to vector<2x64xf32>
    %c0_12 = arith.constant 0 : index
    %c1_13 = arith.constant 1 : index
    %c8_14 = arith.constant 8 : index
    %c0_15 = arith.constant 0 : index
    %19 = vector.load %arg2[%c0_12, %c1_13, %c8_14, %c0_15] : memref<1x4x16x16xf32, #tpu.memory_space<vmem>>, vector<1x1x8x16xf32>
    %20 = vector.shape_cast %19 : vector<1x1x8x16xf32> to vector<8x16xf32>
    %21 = vector.shape_cast %20 : vector<8x16xf32> to vector<8x2x8xf32>
    %22 = tpu.transpose %21, [1, 0, 2] : vector<8x2x8xf32> -> vector<2x8x8xf32>
    %23 = vector.shape_cast %22 : vector<2x8x8xf32> to vector<2x64xf32>
    %24 = tpu.concatenate %18, %23 in 0 : vector<2x64xf32>, vector<2x64xf32> -> vector<4x64xf32>
    %c0_16 = arith.constant 0 : index
    %c0_17 = arith.constant 0 : index
    %c64 = arith.constant 64 : index
    %25 = vector.load %arg3[%c0_16, %c0_17, %c64] : memref<1x4x256xf32, #tpu.memory_space<vmem>>, vector<1x4x64xf32>
    %26 = vector.shape_cast %25 : vector<1x4x64xf32> to vector<4x64xf32>
    %27 = vector.shape_cast %24 : vector<4x64xf32> to vector<1x4x64xf32>
    tpu.vector_store %arg3[%c0_16, %c0_17, %c64], %27 {strides = array<i32>} : memref<1x4x256xf32, #tpu.memory_space<vmem>>, vector<1x4x64xf32>,
    %c0_18 = arith.constant 0 : index
    %c2 = arith.constant 2 : index
    %c0_19 = arith.constant 0 : index
    %c0_20 = arith.constant 0 : index
    %28 = vector.load %arg2[%c0_18, %c2, %c0_19, %c0_20] : memref<1x4x16x16xf32, #tpu.memory_space<vmem>>, vector<1x1x8x16xf32>
    %29 = vector.shape_cast %28 : vector<1x1x8x16xf32> to vector<8x16xf32>
    %30 = vector.shape_cast %29 : vector<8x16xf32> to vector<8x2x8xf32>
    %31 = tpu.transpose %30, [1, 0, 2] : vector<8x2x8xf32> -> vector<2x8x8xf32>
    %32 = vector.shape_cast %31 : vector<2x8x8xf32> to vector<2x64xf32>
    %c0_21 = arith.constant 0 : index
    %c2_22 = arith.constant 2 : index
    %c8_23 = arith.constant 8 : index
    %c0_24 = arith.constant 0 : index
    %33 = vector.load %arg2[%c0_21, %c2_22, %c8_23, %c0_24] : memref<1x4x16x16xf32, #tpu.memory_space<vmem>>, vector<1x1x8x16xf32>
    %34 = vector.shape_cast %33 : vector<1x1x8x16xf32> to vector<8x16xf32>
    %35 = vector.shape_cast %34 : vector<8x16xf32> to vector<8x2x8xf32>
    %36 = tpu.transpose %35, [1, 0, 2] : vector<8x2x8xf32> -> vector<2x8x8xf32>
    %37 = vector.shape_cast %36 : vector<2x8x8xf32> to vector<2x64xf32>
    %38 = tpu.concatenate %32, %37 in 0 : vector<2x64xf32>, vector<2x64xf32> -> vector<4x64xf32>
    %c0_25 = arith.constant 0 : index
    %c0_26 = arith.constant 0 : index
    %c128 = arith.constant 128 : index
    %39 = vector.load %arg3[%c0_25, %c0_26, %c128] : memref<1x4x256xf32, #tpu.memory_space<vmem>>, vector<1x4x64xf32>
    %40 = vector.shape_cast %39 : vector<1x4x64xf32> to vector<4x64xf32>
    %41 = vector.shape_cast %38 : vector<4x64xf32> to vector<1x4x64xf32>
    tpu.vector_store %arg3[%c0_25, %c0_26, %c128], %41 {strides = array<i32>} : memref<1x4x256xf32, #tpu.memory_space<vmem>>, vector<1x4x64xf32>,
    %c0_27 = arith.constant 0 : index
    %c3 = arith.constant 3 : index
    %c0_28 = arith.constant 0 : index
    %c0_29 = arith.constant 0 : index
    %42 = vector.load %arg2[%c0_27, %c3, %c0_28, %c0_29] : memref<1x4x16x16xf32, #tpu.memory_space<vmem>>, vector<1x1x8x16xf32>
    %43 = vector.shape_cast %42 : vector<1x1x8x16xf32> to vector<8x16xf32>
    %44 = vector.shape_cast %43 : vector<8x16xf32> to vector<8x2x8xf32>
    %45 = tpu.transpose %44, [1, 0, 2] : vector<8x2x8xf32> -> vector<2x8x8xf32>
    %46 = vector.shape_cast %45 : vector<2x8x8xf32> to vector<2x64xf32>
    %c0_30 = arith.constant 0 : index
    %c3_31 = arith.constant 3 : index
    %c8_32 = arith.constant 8 : index
    %c0_33 = arith.constant 0 : index
    %47 = vector.load %arg2[%c0_30, %c3_31, %c8_32, %c0_33] : memref<1x4x16x16xf32, #tpu.memory_space<vmem>>, vector<1x1x8x16xf32>
    %48 = vector.shape_cast %47 : vector<1x1x8x16xf32> to vector<8x16xf32>
    %49 = vector.shape_cast %48 : vector<8x16xf32> to vector<8x2x8xf32>
    %50 = tpu.transpose %49, [1, 0, 2] : vector<8x2x8xf32> -> vector<2x8x8xf32>
    %51 = vector.shape_cast %50 : vector<2x8x8xf32> to vector<2x64xf32>
    %52 = tpu.concatenate %46, %51 in 0 : vector<2x64xf32>, vector<2x64xf32> -> vector<4x64xf32>
    %c0_34 = arith.constant 0 : index
    %c0_35 = arith.constant 0 : index
    %c192 = arith.constant 192 : index
    %53 = vector.load %arg3[%c0_34, %c0_35, %c192] : memref<1x4x256xf32, #tpu.memory_space<vmem>>, vector<1x4x64xf32>
    %54 = vector.shape_cast %53 : vector<1x4x64xf32> to vector<4x64xf32>
    %55 = vector.shape_cast %52 : vector<4x64xf32> to vector<1x4x64xf32>
    tpu.vector_store %arg3[%c0_34, %c0_35, %c192], %55 {strides = array<i32>} : memref<1x4x256xf32, #tpu.memory_space<vmem>>, vector<1x4x64xf32>,
    return
  }
  func.func @transform_0(%arg0: i32, %arg1: i32) -> (i32, i32, i32, i32) {
    %c0_i32 = arith.constant 0 : i32
    %c0_i32_0 = arith.constant 0 : i32
    %c0_i32_1 = arith.constant 0 : i32
    return %arg0, %c0_i32, %arg1, %c0_i32_0 : i32, i32, i32, i32
  }
  func.func @transform_1(%arg0: i32, %arg1: i32) -> (i32, i32, i32) {
    %c0_i32 = arith.constant 0 : i32
    %c0_i32_0 = arith.constant 0 : i32
    return %arg0, %arg1, %c0_i32 : i32, i32, i32
  }
}

</mosaic_0001>

<llo_original>
// kernel: tpu_custom_call.1
$region0: #{tpu_custom_call.1}
  #allocation0 [shape = 'u32[]', space=smem, size = 0x4, offset = 0x4, fixed_abs, tag = 'smem constant byte address 0x4 - core index']
  #allocation1 [shape = 'u32[144,128]{1,0:T(1,128)}', space=vmem, size = 0x12000, scoped, tag = 'internal scratch']
  %s0 = inlined_call_operand.hbm [shape: f32[2,4,16,16], index: 0, kind: input, shape index: {}]
  %s1 = inlined_call_operand.hbm [shape: f32[2,4,256], index: 1, kind: output, shape index: {}]
  %s2 = sld [smem:[#allocation0]]
  $region41: #{tpu_custom_call.1} parent=0
    _
  %s4 = ssub.s32 1, %s2
  %s5 = scalar_select 0, %s4, %s2
  $region1: #{tpu_custom_call.1} parent=0
    #allocation2 [shape = 'u8[65536]{0}', space=vmem, size = 0x10000, scoped, tag = 'input window, operand 0']
    #allocation3 [shape = 's32[2]{0}', space=sflag, size = 0x8, scoped, tag = 'scoped memory for tpu_custom_call.1']
    #allocation4 [shape = 's32[2]{0}', space=sflag, size = 0x8, scoped, tag = 'scoped memory for tpu_custom_call.1']
    #allocation5 [shape = 'u8[8192]{0}', space=vmem, size = 0x2000, scoped, tag = 'output window, operand 0']
    %6 = vsyncpa [#allocation3], 0
    %s7 = scalar_lea.sflag [#allocation3], 1
    %8 = vsyncpa %s7, 0
    %9 = vsyncpa [#allocation4], 0
    %s10 = scalar_lea.sflag [#allocation4], 1
    %11 = vsyncpa %s10, 0
    loop: start=0, step=1, limit=4
    $region2: #{tpu_custom_call.1} parent=1 // loop_pre_header
      _
    $region3: #{tpu_custom_call.1} parent=1 // loop_header
      %s13 = sphi 0, %s17
      %p14 = scmp.ge.s32.totalorder %s13, 4
      %s20 = sphi 0, %s32
      %s21 = sphi 0, %s28
      %s22 = sphi 0, %s20
      %s23 = sphi 0, %s21
      %s24 = sphi 0, %s22
      %s25 = sphi 0, %s23
      %s37 = sphi 0, %s39
      %s40 = sphi 0, %s37
      %s41 = sphi 0, %s40
      %s57 = sphi 0, %s41
      %s65 = sphi 0, %s67
      %s68 = sphi 0, %s65
      %s69 = sphi 0, %s68
      %s85 = sphi 0, %s69
    $region4: #{tpu_custom_call.1} parent=1 // loop_header_branch
      %16 = sbr.rel (%p14) target = $region8
    $region5: #{tpu_custom_call.1} parent=1 // loop_body
      %s18 = ssub.s32 %s13, 1
      %s19 = ssub.s32 %s13, 2
      %s26 = sadd.s32 1, %s21
      %p27 = scmp.ge.s32.totalorder %s26, 1
      %s28 = scalar_select %p27, 0, %s26
      %s29 = sadd.s32 1, %s20
      %s30 = scalar_select %p27, %s29, %s20
      %p31 = scmp.ge.s32.totalorder %s30, 2
      %s32 = scalar_select %p31, 0, %s30
      %s33 = ssub.s32 %s20, %s32
      %s34 = ssub.s32 %s21, %s28
      %s35 = sor.u32 %s33, %s34
      %p36 = scmp.eq.s32.totalorder %s35, 0
      %s38 = sadd.s32 %s37, 1
      %s39 = scalar_select %p36, %s37, %s38
      %p42 = pneg %p36
      %p43 = scmp.eq.s32.totalorder %s13, 1
      %p44 = por %p42, %p43
      %p45 = scmp.ne.s32.totalorder %s37, %s40
      %p46 = scmp.eq.s32.totalorder %s13, 0
      %p47 = por %p45, %p46
      %p48 = scmp.ne.s32.totalorder %s37, %s40
      %p49 = scmp.eq.s32.totalorder %s18, 1
      %p50 = por %p48, %p49
      %p51 = scmp.ne.s32.totalorder %s40, %s41
      %p52 = scmp.eq.s32.totalorder %s18, 0
      %p53 = por %p51, %p52
      %p54 = scmp.ne.s32.totalorder %s40, %s41
      %p55 = scmp.eq.s32.totalorder %s19, 1
      %p56 = por %p54, %p55
      %p58 = scmp.ne.s32.totalorder %s41, %s57
      %p59 = scmp.eq.s32.totalorder %s19, 0
      %p60 = por %p58, %p59
      %s61 = ssub.s32 %s20, %s32
      %s62 = ssub.s32 %s21, %s28
      %s63 = sor.u32 %s61, %s62
      %p64 = scmp.eq.s32.totalorder %s63, 0
      %s66 = sadd.s32 %s65, 1
      %s67 = scalar_select %p64, %s65, %s66
      %p70 = pneg %p64
      %p71 = scmp.eq.s32.totalorder %s13, 1
      %p72 = por %p70, %p71
      %p73 = scmp.ne.s32.totalorder %s65, %s68
      %p74 = scmp.eq.s32.totalorder %s13, 0
      %p75 = por %p73, %p74
      %p76 = scmp.ne.s32.totalorder %s65, %s68
      %p77 = scmp.eq.s32.totalorder %s18, 1
      %p78 = por %p76, %p77
      %p79 = scmp.ne.s32.totalorder %s68, %s69
      %p80 = scmp.eq.s32.totalorder %s18, 0
      %p81 = por %p79, %p80
      %p82 = scmp.ne.s32.totalorder %s68, %s69
      %p83 = scmp.eq.s32.totalorder %s19, 1
      %p84 = por %p82, %p83
      %p86 = scmp.ne.s32.totalorder %s69, %s85
      %p87 = scmp.eq.s32.totalorder %s19, 0
      %p88 = por %p86, %p87
      %p89 = scmp.le.s32.totalorder 1, %s13
      %p90 = scmp.lt.s32.totalorder %s13, 3
      %p91 = pnand %p89, %p90
      %p92 = pneg %p91
      // Predicated region
      $region9: #{tpu_custom_call.1} parent=5 // pred_check
        _
      $region10: #{tpu_custom_call.1} parent=5 // pred_check_branch
        %94 = sbr.rel (%p91) target = $region12
      $region11: #{tpu_custom_call.1} parent=5 // pred_region
        %s95 = ssub.s32 %s13, 1
      $region12: #{tpu_custom_call.1} parent=5 // pred_fallthru
        _
      %p96 = scmp.lt.s32.totalorder %s13, 2
      // Predicated region
      $region13: #{tpu_custom_call.1} parent=5 // pred_check
        %p97 = pneg %p96
      $region14: #{tpu_custom_call.1} parent=5 // pred_check_branch
        %99 = sbr.rel (%p97) target = $region16
      $region15: #{tpu_custom_call.1} parent=5 // pred_region
        // Predicated region
        $region17: #{tpu_custom_call.1} parent=15 // pred_check
          %p100 = pneg %p47
        $region18: #{tpu_custom_call.1} parent=15 // pred_check_branch
          %102 = sbr.rel (%p100) target = $region20
        $region19: #{tpu_custom_call.1} parent=15 // pred_region
          %s103 = sand.u32 %s37, 1
          %s104 = scalar_lea.sflag [#allocation3], %s103
          %s105 = sand.u32 %s37, 1
          %s106 = smul.addr %s105, 64
          %s107 = scalar_lea.vmem [#allocation2], %s106
          %s108 = smul.u32 2, %s21
          %s110 = ssub.s32 1024, 1024
          %111 = vsyncadd %s104, %s110
          %s112 = smul.addr %s20, 8
          %s113 = sadd.s32 %s108, %s112
          %s114 = smul.addr %s113, 128
          %s115 = scalar_lea.hbm %s0, %s114
          %s116 = sshll.u32 %s107, 4
          %s117 = int_to_ptr.vmem [resolvable:$true] %s116
          %122 = dma.hbm_to_vmem [thread:$0]  %s115, 1024, %s117, %s104, 128, 128, 8
        $region20: #{tpu_custom_call.1} parent=15 // pred_fallthru
          _
      $region16: #{tpu_custom_call.1} parent=5 // pred_fallthru
        _
      %p123 = scmp.le.s32.totalorder 1, %s13
      %p124 = scmp.lt.s32.totalorder %s13, 3
      %p125 = pnand %p123, %p124
      %p126 = pneg %p125
      // Predicated region
      $region21: #{tpu_custom_call.1} parent=5 // pred_check
        _
      $region22: #{tpu_custom_call.1} parent=5 // pred_check_branch
        %128 = sbr.rel (%p125) target = $region24
      $region23: #{tpu_custom_call.1} parent=5 // pred_region
        %s129 = ssub.s32 %s13, 1
        %s130 = sand.u32 %s40, 1
        %s131 = scalar_lea.sflag [#allocation3], %s130
        %s132 = sand.u32 %s40, 1
        %s133 = smul.addr %s132, 64
        %s134 = scalar_lea.vmem [#allocation2], %s133
        // Predicated region
        $region25: #{tpu_custom_call.1} parent=23 // pred_check
          %p135 = pneg %p53
        $region26: #{tpu_custom_call.1} parent=23 // pred_check_branch
          %137 = sbr.rel (%p135) target = $region28
        $region27: #{tpu_custom_call.1} parent=23 // pred_region
          %138 = dma.done %s131, 1024
        $region28: #{tpu_custom_call.1} parent=23 // pred_fallthru
          _
        %s139 = sand.u32 %s40, 1
        %s140 = scalar_lea.sflag [#allocation3], %s139
        %s141 = sand.u32 %s40, 1
        %s142 = smul.addr %s141, 64
        %s143 = scalar_lea.vmem [#allocation2], %s142
        %p144 = pneg %p53
        %p145 = pneg %p50
        %p146 = pneg %p81
        %p147 = pneg %p78
        %s148 = sand.u32 %s68, 1
        %s149 = scalar_lea.sflag [#allocation4], %s148
        %s150 = sand.u32 %s68, 1
        %s151 = smul.addr %s150, 8
        %s152 = scalar_lea.vmem [#allocation5], %s151
        %s153 = smul.u32 2, %s23
        %v154 = vld [vmem:[%s134] sm:$0xff]
        %156 = vrot.lane.b32.xlu0 %v154, 120
        %v157 = vpop.permute.xlu0 %156
        %v159 = vcombine.high %v154, 0.0
        %v161 = vunpack.c.l.s4 1983009808
        %v162 = vunpack.c.0.s8 %v161
        %v163 = vlaneseq
        %v164 = vshrl.u32 %v163, 7
        %v165 = vsub.s32 %v162, %v164
        %v166 = vrot.slane %v154, %v165
        %v168 = vunpack.c.l.s4 1983009808
        %v169 = vunpack.c.0.s8 %v168
        %v170 = vlaneseq
        %v171 = vshrl.u32 %v170, 7
        %v172 = vsub.s32 %v169, %v171
        %v173 = vrot.slane %v159, %v172
        %v174 = vcombine.high %v157, 0.0
        %v176 = vunpack.c.l.s4 1983009808
        %v177 = vunpack.c.0.s8 %v176
        %v178 = vlaneseq
        %v179 = vshrl.u32 %v178, 7
        %v180 = vsub.s32 %v177, %v179
        %v181 = vrot.slane %v157, %v180
        %v183 = vunpack.c.l.s4 1983009808
        %v184 = vunpack.c.0.s8 %v183
        %v185 = vlaneseq
        %v186 = vshrl.u32 %v185, 7
        %v187 = vsub.s32 %v184, %v186
        %v188 = vrot.slane %v174, %v187
        %v189 = vcombine.low %v166, %v181
        %v190 = vcombine.high %v166, %v181
        %v192 = vunpack.c.l.s4 1934713408
        %v193 = vunpack.c.0.s8 %v192
        %v194 = vlaneseq
        %v195 = vshrl.u32 %v194, 7
        %v196 = vsub.s32 %v193, %v195
        %v197 = vrot.slane %v189, %v196
        %v199 = vunpack.c.l.s4 1934713408
        %v200 = vunpack.c.0.s8 %v199
        %v201 = vlaneseq
        %v202 = vshrl.u32 %v201, 7
        %v203 = vsub.s32 %v200, %v202
        %v204 = vrot.slane %v190, %v203
        %v205 = vcombine.low %v173, %v188
        %v206 = vcombine.high %v173, %v188
        %v208 = vunpack.c.l.s4 1934713408
        %v209 = vunpack.c.0.s8 %v208
        %v210 = vlaneseq
        %v211 = vshrl.u32 %v210, 7
        %v212 = vsub.s32 %v209, %v211
        %v213 = vrot.slane %v205, %v212
        %v215 = vunpack.c.l.s4 1934713408
        %v216 = vunpack.c.0.s8 %v215
        %v217 = vlaneseq
        %v218 = vshrl.u32 %v217, 7
        %v219 = vsub.s32 %v216, %v218
        %v220 = vrot.slane %v206, %v219
        %v221 = vcombine.high %v197, 0.0
        %v222 = vcombine.high %v204, 0.0
        %v223 = vcombine.high %v213, 0.0
        %v224 = vcombine.high %v220, 0.0
        %v225 = vcombine.low %v197, %v204
        %v227 = vunpack.c.l.s4 1983009808
        %v228 = vunpack.c.0.s8 %v227
        %v229 = vlaneseq
        %v230 = vshrl.u32 %v229, 7
        %v231 = vsub.s32 %v228, %v230
        %v232 = vrot.slane %v225, %v231
        %v233 = vcombine.low %v221, %v222
        %v235 = vunpack.c.l.s4 1983009808
        %v236 = vunpack.c.0.s8 %v235
        %v237 = vlaneseq
        %v238 = vshrl.u32 %v237, 7
        %v239 = vsub.s32 %v236, %v238
        %v240 = vrot.slane %v233, %v239
        %v241 = vcombine.low %v213, %v220
        %v243 = vunpack.c.l.s4 1983009808
        %v244 = vunpack.c.0.s8 %v243
        %v245 = vlaneseq
        %v246 = vshrl.u32 %v245, 7
        %v247 = vsub.s32 %v244, %v246
        %v248 = vrot.slane %v241, %v247
        %v249 = vcombine.low %v223, %v224
        %v251 = vunpack.c.l.s4 1983009808
        %v252 = vunpack.c.0.s8 %v251
        %v253 = vlaneseq
        %v254 = vshrl.u32 %v253, 7
        %v255 = vsub.s32 %v252, %v254
        %v256 = vrot.slane %v249, %v255
        %v257 = vcombine.low %v232, %v240
        %v259 = vunpack.c.l.s4 1934713408
        %v260 = vunpack.c.0.s8 %v259
        %v261 = vlaneseq
        %v262 = vshrl.u32 %v261, 7
        %v263 = vsub.s32 %v260, %v262
        %v264 = vrot.slane %v257, %v263
        %v265 = vcombine.low %v248, %v256
        %v267 = vunpack.c.l.s4 1934713408
        %v268 = vunpack.c.0.s8 %v267
        %v269 = vlaneseq
        %v270 = vshrl.u32 %v269, 7
        %v271 = vsub.s32 %v268, %v270
        %v272 = vrot.slane %v265, %v271
        %v273 = vcombine.low %v264, %v272
        %v274 = vcombine.high %v264, %v272
        %v275 = vcombine.high %v273, 0.0
        %v277 = vunpack.c.l.s4 1983009808
        %v278 = vunpack.c.0.s8 %v277
        %v279 = vlaneseq
        %v280 = vshrl.u32 %v279, 7
        %v281 = vsub.s32 %v278, %v280
        %v282 = vrot.slane %v273, %v281
        %v284 = vunpack.c.l.s4 1983009808
        %v285 = vunpack.c.0.s8 %v284
        %v286 = vlaneseq
        %v287 = vshrl.u32 %v286, 7
        %v288 = vsub.s32 %v285, %v287
        %v289 = vrot.slane %v275, %v288
        %v290 = vcombine.high %v274, 0.0
        %v292 = vunpack.c.l.s4 1983009808
        %v293 = vunpack.c.0.s8 %v292
        %v294 = vlaneseq
        %v295 = vshrl.u32 %v294, 7
        %v296 = vsub.s32 %v293, %v295
        %v297 = vrot.slane %v274, %v296
        %v299 = vunpack.c.l.s4 1983009808
        %v300 = vunpack.c.0.s8 %v299
        %v301 = vlaneseq
        %v302 = vshrl.u32 %v301, 7
        %v303 = vsub.s32 %v300, %v302
        %v304 = vrot.slane %v290, %v303
        %v305 = vcombine.low %v282, %v297
        %v306 = vcombine.high %v282, %v297
        %v308 = vunpack.c.l.s4 1934713408
        %v309 = vunpack.c.0.s8 %v308
        %v310 = vlaneseq
        %v311 = vshrl.u32 %v310, 7
        %v312 = vsub.s32 %v309, %v311
        %v313 = vrot.slane %v305, %v312
        %v315 = vunpack.c.l.s4 1934713408
        %v316 = vunpack.c.0.s8 %v315
        %v317 = vlaneseq
        %v318 = vshrl.u32 %v317, 7
        %v319 = vsub.s32 %v316, %v318
        %v320 = vrot.slane %v306, %v319
        %v321 = vcombine.low %v289, %v304
        %v322 = vcombine.high %v289, %v304
        %v324 = vunpack.c.l.s4 1934713408
        %v325 = vunpack.c.0.s8 %v324
        %v326 = vlaneseq
        %v327 = vshrl.u32 %v326, 7
        %v328 = vsub.s32 %v325, %v327
        %v329 = vrot.slane %v321, %v328
        %v331 = vunpack.c.l.s4 1934713408
        %v332 = vunpack.c.0.s8 %v331
        %v333 = vlaneseq
        %v334 = vshrl.u32 %v333, 7
        %v335 = vsub.s32 %v332, %v334
        %v336 = vrot.slane %v322, %v335
        %v337 = vcombine.high %v313, 0.0
        %v338 = vcombine.high %v320, 0.0
        %v339 = vcombine.high %v329, 0.0
        %v340 = vcombine.high %v336, 0.0
        %342 = vrot.lane.b32.xlu0 %v337, 8
        %v343 = vpop.permute.xlu0 %342
        %346 = vrot.lane.b32.xlu0 %v320, 16
        %v347 = vpop.permute.xlu0 %346
        %350 = vrot.lane.b32.xlu0 %v338, 24
        %v351 = vpop.permute.xlu0 %350
        %354 = vrot.lane.b32.xlu0 %v329, 32
        %v355 = vpop.permute.xlu0 %354
        %358 = vrot.lane.b32.xlu0 %v339, 40
        %v359 = vpop.permute.xlu0 %358
        %362 = vrot.lane.b32.xlu0 %v336, 48
        %v363 = vpop.permute.xlu0 %362
        %366 = vrot.lane.b32.xlu0 %v340, 56
        %v367 = vpop.permute.xlu0 %366
        %vm369 = vcmask 64512
        %v370 = vsel %vm369, %v313, %v343
        %vm371 = vcmask 130048
        %v372 = vsel %vm371, %v370, %v347
        %vm373 = vcmask 195584
        %v374 = vsel %vm373, %v372, %v351
        %vm375 = vcmask 261120
        %v376 = vsel %vm375, %v374, %v355
        %vm377 = vcmask 326656
        %v378 = vsel %vm377, %v376, %v359
        %vm379 = vcmask 392192
        %v380 = vsel %vm379, %v378, %v363
        %vm381 = vcmask 457728
        %v382 = vsel %vm381, %v380, %v367
        %v383 = vld [vmem:[%s134 + $0x8] sm:$0xff]
        %385 = vrot.lane.b32.xlu0 %v383, 120
        %v386 = vpop.permute.xlu0 %385
        %v388 = vcombine.high %v383, 0.0
        %v390 = vunpack.c.l.s4 1983009808
        %v391 = vunpack.c.0.s8 %v390
        %v392 = vlaneseq
        %v393 = vshrl.u32 %v392, 7
        %v394 = vsub.s32 %v391, %v393
        %v395 = vrot.slane %v383, %v394
        %v397 = vunpack.c.l.s4 1983009808
        %v398 = vunpack.c.0.s8 %v397
        %v399 = vlaneseq
        %v400 = vshrl.u32 %v399, 7
        %v401 = vsub.s32 %v398, %v400
        %v402 = vrot.slane %v388, %v401
        %v403 = vcombine.high %v386, 0.0
        %v405 = vunpack.c.l.s4 1983009808
        %v406 = vunpack.c.0.s8 %v405
        %v407 = vlaneseq
        %v408 = vshrl.u32 %v407, 7
        %v409 = vsub.s32 %v406, %v408
        %v410 = vrot.slane %v386, %v409
        %v412 = vunpack.c.l.s4 1983009808
        %v413 = vunpack.c.0.s8 %v412
        %v414 = vlaneseq
        %v415 = vshrl.u32 %v414, 7
        %v416 = vsub.s32 %v413, %v415
        %v417 = vrot.slane %v403, %v416
        %v418 = vcombine.low %v395, %v410
        %v419 = vcombine.high %v395, %v410
        %v421 = vunpack.c.l.s4 1934713408
        %v422 = vunpack.c.0.s8 %v421
        %v423 = vlaneseq
        %v424 = vshrl.u32 %v423, 7
        %v425 = vsub.s32 %v422, %v424
        %v426 = vrot.slane %v418, %v425
        %v428 = vunpack.c.l.s4 1934713408
        %v429 = vunpack.c.0.s8 %v428
        %v430 = vlaneseq
        %v431 = vshrl.u32 %v430, 7
        %v432 = vsub.s32 %v429, %v431
        %v433 = vrot.slane %v419, %v432
        %v434 = vcombine.low %v402, %v417
        %v435 = vcombine.high %v402, %v417
        %v437 = vunpack.c.l.s4 1934713408
        %v438 = vunpack.c.0.s8 %v437
        %v439 = vlaneseq
        %v440 = vshrl.u32 %v439, 7
        %v441 = vsub.s32 %v438, %v440
        %v442 = vrot.slane %v434, %v441
        %v444 = vunpack.c.l.s4 1934713408
        %v445 = vunpack.c.0.s8 %v444
        %v446 = vlaneseq
        %v447 = vshrl.u32 %v446, 7
        %v448 = vsub.s32 %v445, %v447
        %v449 = vrot.slane %v435, %v448
        %v450 = vcombine.high %v426, 0.0
        %v451 = vcombine.high %v433, 0.0
        %v452 = vcombine.high %v442, 0.0
        %v453 = vcombine.high %v449, 0.0
        %v454 = vcombine.low %v426, %v433
        %v456 = vunpack.c.l.s4 1983009808
        %v457 = vunpack.c.0.s8 %v456
        %v458 = vlaneseq
        %v459 = vshrl.u32 %v458, 7
        %v460 = vsub.s32 %v457, %v459
        %v461 = vrot.slane %v454, %v460
        %v462 = vcombine.low %v450, %v451
        %v464 = vunpack.c.l.s4 1983009808
        %v465 = vunpack.c.0.s8 %v464
        %v466 = vlaneseq
        %v467 = vshrl.u32 %v466, 7
        %v468 = vsub.s32 %v465, %v467
        %v469 = vrot.slane %v462, %v468
        %v470 = vcombine.low %v442, %v449
        %v472 = vunpack.c.l.s4 1983009808
        %v473 = vunpack.c.0.s8 %v472
        %v474 = vlaneseq
        %v475 = vshrl.u32 %v474, 7
        %v476 = vsub.s32 %v473, %v475
        %v477 = vrot.slane %v470, %v476
        %v478 = vcombine.low %v452, %v453
        %v480 = vunpack.c.l.s4 1983009808
        %v481 = vunpack.c.0.s8 %v480
        %v482 = vlaneseq
        %v483 = vshrl.u32 %v482, 7
        %v484 = vsub.s32 %v481, %v483
        %v485 = vrot.slane %v478, %v484
        %v486 = vcombine.low %v461, %v469
        %v488 = vunpack.c.l.s4 1934713408
        %v489 = vunpack.c.0.s8 %v488
        %v490 = vlaneseq
        %v491 = vshrl.u32 %v490, 7
        %v492 = vsub.s32 %v489, %v491
        %v493 = vrot.slane %v486, %v492
        %v494 = vcombine.low %v477, %v485
        %v496 = vunpack.c.l.s4 1934713408
        %v497 = vunpack.c.0.s8 %v496
        %v498 = vlaneseq
        %v499 = vshrl.u32 %v498, 7
        %v500 = vsub.s32 %v497, %v499
        %v501 = vrot.slane %v494, %v500
        %v502 = vcombine.low %v493, %v501
        %v503 = vcombine.high %v493, %v501
        %v504 = vcombine.high %v502, 0.0
        %v506 = vunpack.c.l.s4 1983009808
        %v507 = vunpack.c.0.s8 %v506
        %v508 = vlaneseq
        %v509 = vshrl.u32 %v508, 7
        %v510 = vsub.s32 %v507, %v509
        %v511 = vrot.slane %v502, %v510
        %v513 = vunpack.c.l.s4 1983009808
        %v514 = vunpack.c.0.s8 %v513
        %v515 = vlaneseq
        %v516 = vshrl.u32 %v515, 7
        %v517 = vsub.s32 %v514, %v516
        %v518 = vrot.slane %v504, %v517
        %v519 = vcombine.high %v503, 0.0
        %v521 = vunpack.c.l.s4 1983009808
        %v522 = vunpack.c.0.s8 %v521
        %v523 = vlaneseq
        %v524 = vshrl.u32 %v523, 7
        %v525 = vsub.s32 %v522, %v524
        %v526 = vrot.slane %v503, %v525
        %v528 = vunpack.c.l.s4 1983009808
        %v529 = vunpack.c.0.s8 %v528
        %v530 = vlaneseq
        %v531 = vshrl.u32 %v530, 7
        %v532 = vsub.s32 %v529, %v531
        %v533 = vrot.slane %v519, %v532
        %v534 = vcombine.low %v511, %v526
        %v535 = vcombine.high %v511, %v526
        %v537 = vunpack.c.l.s4 1934713408
        %v538 = vunpack.c.0.s8 %v537
        %v539 = vlaneseq
        %v540 = vshrl.u32 %v539, 7
        %v541 = vsub.s32 %v538, %v540
        %v542 = vrot.slane %v534, %v541
        %v544 = vunpack.c.l.s4 1934713408
        %v545 = vunpack.c.0.s8 %v544
        %v546 = vlaneseq
        %v547 = vshrl.u32 %v546, 7
        %v548 = vsub.s32 %v545, %v547
        %v549 = vrot.slane %v535, %v548
        %v550 = vcombine.low %v518, %v533
        %v551 = vcombine.high %v518, %v533
        %v553 = vunpack.c.l.s4 1934713408
        %v554 = vunpack.c.0.s8 %v553
        %v555 = vlaneseq
        %v556 = vshrl.u32 %v555, 7
        %v557 = vsub.s32 %v554, %v556
        %v558 = vrot.slane %v550, %v557
        %v560 = vunpack.c.l.s4 1934713408
        %v561 = vunpack.c.0.s8 %v560
        %v562 = vlaneseq
        %v563 = vshrl.u32 %v562, 7
        %v564 = vsub.s32 %v561, %v563
        %v565 = vrot.slane %v551, %v564
        %v566 = vcombine.high %v542, 0.0
        %v567 = vcombine.high %v549, 0.0
        %v568 = vcombine.high %v558, 0.0
        %v569 = vcombine.high %v565, 0.0
        %571 = vrot.lane.b32.xlu0 %v566, 8
        %v572 = vpop.permute.xlu0 %571
        %575 = vrot.lane.b32.xlu0 %v549, 16
        %v576 = vpop.permute.xlu0 %575
        %579 = vrot.lane.b32.xlu0 %v567, 24
        %v580 = vpop.permute.xlu0 %579
        %583 = vrot.lane.b32.xlu0 %v558, 32
        %v584 = vpop.permute.xlu0 %583
        %587 = vrot.lane.b32.xlu0 %v568, 40
        %v588 = vpop.permute.xlu0 %587
        %591 = vrot.lane.b32.xlu0 %v565, 48
        %v592 = vpop.permute.xlu0 %591
        %595 = vrot.lane.b32.xlu0 %v569, 56
        %v596 = vpop.permute.xlu0 %595
        %v598 = vsel %vm369, %v542, %v572
        %v599 = vsel %vm371, %v598, %v576
        %v600 = vsel %vm373, %v599, %v580
        %v601 = vsel %vm375, %v600, %v584
        %v602 = vsel %vm377, %v601, %v588
        %v603 = vsel %vm379, %v602, %v592
        %v604 = vsel %vm381, %v603, %v596
        %v606 = vrot.slane %v604, 6
        %vm608 = vcmask 1041408
        %v609 = vsel %vm608, %v382, %v606
        %vm610 = vcmask 519168
        %611 = vst.msk [vmem:[%s152] sm:$0xf] %vm610, %v609
        %s612 = scalar_lea.vmem %s134, 16 [#allocation2]
        %v613 = vld [vmem:[%s612] sm:$0xff]
        %615 = vrot.lane.b32.xlu0 %v613, 120
        %v616 = vpop.permute.xlu0 %615
        %v618 = vcombine.high %v613, 0.0
        %v620 = vunpack.c.l.s4 1983009808
        %v621 = vunpack.c.0.s8 %v620
        %v622 = vlaneseq
        %v623 = vshrl.u32 %v622, 7
        %v624 = vsub.s32 %v621, %v623
        %v625 = vrot.slane %v613, %v624
        %v627 = vunpack.c.l.s4 1983009808
        %v628 = vunpack.c.0.s8 %v627
        %v629 = vlaneseq
        %v630 = vshrl.u32 %v629, 7
        %v631 = vsub.s32 %v628, %v630
        %v632 = vrot.slane %v618, %v631
        %v633 = vcombine.high %v616, 0.0
        %v635 = vunpack.c.l.s4 1983009808
        %v636 = vunpack.c.0.s8 %v635
        %v637 = vlaneseq
        %v638 = vshrl.u32 %v637, 7
        %v639 = vsub.s32 %v636, %v638
        %v640 = vrot.slane %v616, %v639
        %v642 = vunpack.c.l.s4 1983009808
        %v643 = vunpack.c.0.s8 %v642
        %v644 = vlaneseq
        %v645 = vshrl.u32 %v644, 7
        %v646 = vsub.s32 %v643, %v645
        %v647 = vrot.slane %v633, %v646
        %v648 = vcombine.low %v625, %v640
        %v649 = vcombine.high %v625, %v640
        %v651 = vunpack.c.l.s4 1934713408
        %v652 = vunpack.c.0.s8 %v651
        %v653 = vlaneseq
        %v654 = vshrl.u32 %v653, 7
        %v655 = vsub.s32 %v652, %v654
        %v656 = vrot.slane %v648, %v655
        %v658 = vunpack.c.l.s4 1934713408
        %v659 = vunpack.c.0.s8 %v658
        %v660 = vlaneseq
        %v661 = vshrl.u32 %v660, 7
        %v662 = vsub.s32 %v659, %v661
        %v663 = vrot.slane %v649, %v662
        %v664 = vcombine.low %v632, %v647
        %v665 = vcombine.high %v632, %v647
        %v667 = vunpack.c.l.s4 1934713408
        %v668 = vunpack.c.0.s8 %v667
        %v669 = vlaneseq
        %v670 = vshrl.u32 %v669, 7
        %v671 = vsub.s32 %v668, %v670
        %v672 = vrot.slane %v664, %v671
        %v674 = vunpack.c.l.s4 1934713408
        %v675 = vunpack.c.0.s8 %v674
        %v676 = vlaneseq
        %v677 = vshrl.u32 %v676, 7
        %v678 = vsub.s32 %v675, %v677
        %v679 = vrot.slane %v665, %v678
        %v680 = vcombine.high %v656, 0.0
        %v681 = vcombine.high %v663, 0.0
        %v682 = vcombine.high %v672, 0.0
        %v683 = vcombine.high %v679, 0.0
        %v684 = vcombine.low %v656, %v663
        %v686 = vunpack.c.l.s4 1983009808
        %v687 = vunpack.c.0.s8 %v686
        %v688 = vlaneseq
        %v689 = vshrl.u32 %v688, 7
        %v690 = vsub.s32 %v687, %v689
        %v691 = vrot.slane %v684, %v690
        %v692 = vcombine.low %v680, %v681
        %v694 = vunpack.c.l.s4 1983009808
        %v695 = vunpack.c.0.s8 %v694
        %v696 = vlaneseq
        %v697 = vshrl.u32 %v696, 7
        %v698 = vsub.s32 %v695, %v697
        %v699 = vrot.slane %v692, %v698
        %v700 = vcombine.low %v672, %v679
        %v702 = vunpack.c.l.s4 1983009808
        %v703 = vunpack.c.0.s8 %v702
        %v704 = vlaneseq
        %v705 = vshrl.u32 %v704, 7
        %v706 = vsub.s32 %v703, %v705
        %v707 = vrot.slane %v700, %v706
        %v708 = vcombine.low %v682, %v683
        %v710 = vunpack.c.l.s4 1983009808
        %v711 = vunpack.c.0.s8 %v710
        %v712 = vlaneseq
        %v713 = vshrl.u32 %v712, 7
        %v714 = vsub.s32 %v711, %v713
        %v715 = vrot.slane %v708, %v714
        %v716 = vcombine.low %v691, %v699
        %v718 = vunpack.c.l.s4 1934713408
        %v719 = vunpack.c.0.s8 %v718
        %v720 = vlaneseq
        %v721 = vshrl.u32 %v720, 7
        %v722 = vsub.s32 %v719, %v721
        %v723 = vrot.slane %v716, %v722
        %v724 = vcombine.low %v707, %v715
        %v726 = vunpack.c.l.s4 1934713408
        %v727 = vunpack.c.0.s8 %v726
        %v728 = vlaneseq
        %v729 = vshrl.u32 %v728, 7
        %v730 = vsub.s32 %v727, %v729
        %v731 = vrot.slane %v724, %v730
        %v732 = vcombine.low %v723, %v731
        %v733 = vcombine.high %v723, %v731
        %v734 = vcombine.high %v732, 0.0
        %v736 = vunpack.c.l.s4 1983009808
        %v737 = vunpack.c.0.s8 %v736
        %v738 = vlaneseq
        %v739 = vshrl.u32 %v738, 7
        %v740 = vsub.s32 %v737, %v739
        %v741 = vrot.slane %v732, %v740
        %v743 = vunpack.c.l.s4 1983009808
        %v744 = vunpack.c.0.s8 %v743
        %v745 = vlaneseq
        %v746 = vshrl.u32 %v745, 7
        %v747 = vsub.s32 %v744, %v746
        %v748 = vrot.slane %v734, %v747
        %v749 = vcombine.high %v733, 0.0
        %v751 = vunpack.c.l.s4 1983009808
        %v752 = vunpack.c.0.s8 %v751
        %v753 = vlaneseq
        %v754 = vshrl.u32 %v753, 7
        %v755 = vsub.s32 %v752, %v754
        %v756 = vrot.slane %v733, %v755
        %v758 = vunpack.c.l.s4 1983009808
        %v759 = vunpack.c.0.s8 %v758
        %v760 = vlaneseq
        %v761 = vshrl.u32 %v760, 7
        %v762 = vsub.s32 %v759, %v761
        %v763 = vrot.slane %v749, %v762
        %v764 = vcombine.low %v741, %v756
        %v765 = vcombine.high %v741, %v756
        %v767 = vunpack.c.l.s4 1934713408
        %v768 = vunpack.c.0.s8 %v767
        %v769 = vlaneseq
        %v770 = vshrl.u32 %v769, 7
        %v771 = vsub.s32 %v768, %v770
        %v772 = vrot.slane %v764, %v771
        %v774 = vunpack.c.l.s4 1934713408
        %v775 = vunpack.c.0.s8 %v774
        %v776 = vlaneseq
        %v777 = vshrl.u32 %v776, 7
        %v778 = vsub.s32 %v775, %v777
        %v779 = vrot.slane %v765, %v778
        %v780 = vcombine.low %v748, %v763
        %v781 = vcombine.high %v748, %v763
        %v783 = vunpack.c.l.s4 1934713408
        %v784 = vunpack.c.0.s8 %v783
        %v785 = vlaneseq
        %v786 = vshrl.u32 %v785, 7
        %v787 = vsub.s32 %v784, %v786
        %v788 = vrot.slane %v780, %v787
        %v790 = vunpack.c.l.s4 1934713408
        %v791 = vunpack.c.0.s8 %v790
        %v792 = vlaneseq
        %v793 = vshrl.u32 %v792, 7
        %v794 = vsub.s32 %v791, %v793
        %v795 = vrot.slane %v781, %v794
        %v796 = vcombine.high %v772, 0.0
        %v797 = vcombine.high %v779, 0.0
        %v798 = vcombine.high %v788, 0.0
        %v799 = vcombine.high %v795, 0.0
        %801 = vrot.lane.b32.xlu0 %v796, 8
        %v802 = vpop.permute.xlu0 %801
        %805 = vrot.lane.b32.xlu0 %v779, 16
        %v806 = vpop.permute.xlu0 %805
        %809 = vrot.lane.b32.xlu0 %v797, 24
        %v810 = vpop.permute.xlu0 %809
        %813 = vrot.lane.b32.xlu0 %v788, 32
        %v814 = vpop.permute.xlu0 %813
        %817 = vrot.lane.b32.xlu0 %v798, 40
        %v818 = vpop.permute.xlu0 %817
        %821 = vrot.lane.b32.xlu0 %v795, 48
        %v822 = vpop.permute.xlu0 %821
        %825 = vrot.lane.b32.xlu0 %v799, 56
        %v826 = vpop.permute.xlu0 %825
        %v828 = vsel %vm369, %v772, %v802
        %v829 = vsel %vm371, %v828, %v806
        %v830 = vsel %vm373, %v829, %v810
        %v831 = vsel %vm375, %v830, %v814
        %v832 = vsel %vm377, %v831, %v818
        %v833 = vsel %vm379, %v832, %v822
        %v834 = vsel %vm381, %v833, %v826
        %v835 = vld [vmem:[%s612 + $0x8] sm:$0xff]
        %837 = vrot.lane.b32.xlu0 %v835, 120
        %v838 = vpop.permute.xlu0 %837
        %v840 = vcombine.high %v835, 0.0
        %v842 = vunpack.c.l.s4 1983009808
        %v843 = vunpack.c.0.s8 %v842
        %v844 = vlaneseq
        %v845 = vshrl.u32 %v844, 7
        %v846 = vsub.s32 %v843, %v845
        %v847 = vrot.slane %v835, %v846
        %v849 = vunpack.c.l.s4 1983009808
        %v850 = vunpack.c.0.s8 %v849
        %v851 = vlaneseq
        %v852 = vshrl.u32 %v851, 7
        %v853 = vsub.s32 %v850, %v852
        %v854 = vrot.slane %v840, %v853
        %v855 = vcombine.high %v838, 0.0
        %v857 = vunpack.c.l.s4 1983009808
        %v858 = vunpack.c.0.s8 %v857
        %v859 = vlaneseq
        %v860 = vshrl.u32 %v859, 7
        %v861 = vsub.s32 %v858, %v860
        %v862 = vrot.slane %v838, %v861
        %v864 = vunpack.c.l.s4 1983009808
        %v865 = vunpack.c.0.s8 %v864
        %v866 = vlaneseq
        %v867 = vshrl.u32 %v866, 7
        %v868 = vsub.s32 %v865, %v867
        %v869 = vrot.slane %v855, %v868
        %v870 = vcombine.low %v847, %v862
        %v871 = vcombine.high %v847, %v862
        %v873 = vunpack.c.l.s4 1934713408
        %v874 = vunpack.c.0.s8 %v873
        %v875 = vlaneseq
        %v876 = vshrl.u32 %v875, 7
        %v877 = vsub.s32 %v874, %v876
        %v878 = vrot.slane %v870, %v877
        %v880 = vunpack.c.l.s4 1934713408
        %v881 = vunpack.c.0.s8 %v880
        %v882 = vlaneseq
        %v883 = vshrl.u32 %v882, 7
        %v884 = vsub.s32 %v881, %v883
        %v885 = vrot.slane %v871, %v884
        %v886 = vcombine.low %v854, %v869
        %v887 = vcombine.high %v854, %v869
        %v889 = vunpack.c.l.s4 1934713408
        %v890 = vunpack.c.0.s8 %v889
        %v891 = vlaneseq
        %v892 = vshrl.u32 %v891, 7
        %v893 = vsub.s32 %v890, %v892
        %v894 = vrot.slane %v886, %v893
        %v896 = vunpack.c.l.s4 1934713408
        %v897 = vunpack.c.0.s8 %v896
        %v898 = vlaneseq
        %v899 = vshrl.u32 %v898, 7
        %v900 = vsub.s32 %v897, %v899
        %v901 = vrot.slane %v887, %v900
        %v902 = vcombine.high %v878, 0.0
        %v903 = vcombine.high %v885, 0.0
        %v904 = vcombine.high %v894, 0.0
        %v905 = vcombine.high %v901, 0.0
        %v906 = vcombine.low %v878, %v885
        %v908 = vunpack.c.l.s4 1983009808
        %v909 = vunpack.c.0.s8 %v908
        %v910 = vlaneseq
        %v911 = vshrl.u32 %v910, 7
        %v912 = vsub.s32 %v909, %v911
        %v913 = vrot.slane %v906, %v912
        %v914 = vcombine.low %v902, %v903
        %v916 = vunpack.c.l.s4 1983009808
        %v917 = vunpack.c.0.s8 %v916
        %v918 = vlaneseq
        %v919 = vshrl.u32 %v918, 7
        %v920 = vsub.s32 %v917, %v919
        %v921 = vrot.slane %v914, %v920
        %v922 = vcombine.low %v894, %v901
        %v924 = vunpack.c.l.s4 1983009808
        %v925 = vunpack.c.0.s8 %v924
        %v926 = vlaneseq
        %v927 = vshrl.u32 %v926, 7
        %v928 = vsub.s32 %v925, %v927
        %v929 = vrot.slane %v922, %v928
        %v930 = vcombine.low %v904, %v905
        %v932 = vunpack.c.l.s4 1983009808
        %v933 = vunpack.c.0.s8 %v932
        %v934 = vlaneseq
        %v935 = vshrl.u32 %v934, 7
        %v936 = vsub.s32 %v933, %v935
        %v937 = vrot.slane %v930, %v936
        %v938 = vcombine.low %v913, %v921
        %v940 = vunpack.c.l.s4 1934713408
        %v941 = vunpack.c.0.s8 %v940
        %v942 = vlaneseq
        %v943 = vshrl.u32 %v942, 7
        %v944 = vsub.s32 %v941, %v943
        %v945 = vrot.slane %v938, %v944
        %v946 = vcombine.low %v929, %v937
        %v948 = vunpack.c.l.s4 1934713408
        %v949 = vunpack.c.0.s8 %v948
        %v950 = vlaneseq
        %v951 = vshrl.u32 %v950, 7
        %v952 = vsub.s32 %v949, %v951
        %v953 = vrot.slane %v946, %v952
        %v954 = vcombine.low %v945, %v953
        %v955 = vcombine.high %v945, %v953
        %v956 = vcombine.high %v954, 0.0
        %v958 = vunpack.c.l.s4 1983009808
        %v959 = vunpack.c.0.s8 %v958
        %v960 = vlaneseq
        %v961 = vshrl.u32 %v960, 7
        %v962 = vsub.s32 %v959, %v961
        %v963 = vrot.slane %v954, %v962
        %v965 = vunpack.c.l.s4 1983009808
        %v966 = vunpack.c.0.s8 %v965
        %v967 = vlaneseq
        %v968 = vshrl.u32 %v967, 7
        %v969 = vsub.s32 %v966, %v968
        %v970 = vrot.slane %v956, %v969
        %v971 = vcombine.high %v955, 0.0
        %v973 = vunpack.c.l.s4 1983009808
        %v974 = vunpack.c.0.s8 %v973
        %v975 = vlaneseq
        %v976 = vshrl.u32 %v975, 7
        %v977 = vsub.s32 %v974, %v976
        %v978 = vrot.slane %v955, %v977
        %v980 = vunpack.c.l.s4 1983009808
        %v981 = vunpack.c.0.s8 %v980
        %v982 = vlaneseq
        %v983 = vshrl.u32 %v982, 7
        %v984 = vsub.s32 %v981, %v983
        %v985 = vrot.slane %v971, %v984
        %v986 = vcombine.low %v963, %v978
        %v987 = vcombine.high %v963, %v978
        %v989 = vunpack.c.l.s4 1934713408
        %v990 = vunpack.c.0.s8 %v989
        %v991 = vlaneseq
        %v992 = vshrl.u32 %v991, 7
        %v993 = vsub.s32 %v990, %v992
        %v994 = vrot.slane %v986, %v993
        %v996 = vunpack.c.l.s4 1934713408
        %v997 = vunpack.c.0.s8 %v996
        %v998 = vlaneseq
        %v999 = vshrl.u32 %v998, 7
        %v1000 = vsub.s32 %v997, %v999
        %v1001 = vrot.slane %v987, %v1000
        %v1002 = vcombine.low %v970, %v985
        %v1003 = vcombine.high %v970, %v985
        %v1005 = vunpack.c.l.s4 1934713408
        %v1006 = vunpack.c.0.s8 %v1005
        %v1007 = vlaneseq
        %v1008 = vshrl.u32 %v1007, 7
        %v1009 = vsub.s32 %v1006, %v1008
        %v1010 = vrot.slane %v1002, %v1009
        %v1012 = vunpack.c.l.s4 1934713408
        %v1013 = vunpack.c.0.s8 %v1012
        %v1014 = vlaneseq
        %v1015 = vshrl.u32 %v1014, 7
        %v1016 = vsub.s32 %v1013, %v1015
        %v1017 = vrot.slane %v1003, %v1016
        %v1018 = vcombine.high %v994, 0.0
        %v1019 = vcombine.high %v1001, 0.0
        %v1020 = vcombine.high %v1010, 0.0
        %v1021 = vcombine.high %v1017, 0.0
        %1023 = vrot.lane.b32.xlu0 %v1018, 8
        %v1024 = vpop.permute.xlu0 %1023
        %1027 = vrot.lane.b32.xlu0 %v1001, 16
        %v1028 = vpop.permute.xlu0 %1027
        %1031 = vrot.lane.b32.xlu0 %v1019, 24
        %v1032 = vpop.permute.xlu0 %1031
        %1035 = vrot.lane.b32.xlu0 %v1010, 32
        %v1036 = vpop.permute.xlu0 %1035
        %1039 = vrot.lane.b32.xlu0 %v1020, 40
        %v1040 = vpop.permute.xlu0 %1039
        %1043 = vrot.lane.b32.xlu0 %v1017, 48
        %v1044 = vpop.permute.xlu0 %1043
        %1047 = vrot.lane.b32.xlu0 %v1021, 56
        %v1048 = vpop.permute.xlu0 %1047
        %v1050 = vsel %vm369, %v994, %v1024
        %v1051 = vsel %vm371, %v1050, %v1028
        %v1052 = vsel %vm373, %v1051, %v1032
        %v1053 = vsel %vm375, %v1052, %v1036
        %v1054 = vsel %vm377, %v1053, %v1040
        %v1055 = vsel %vm379, %v1054, %v1044
        %v1056 = vsel %vm381, %v1055, %v1048
        %v1058 = vrot.slane %v1056, 6
        %v1060 = vsel %vm608, %v834, %v1058
        %1062 = vrot.lane.b32.xlu0 %v1060, 64
        %v1063 = vpop.permute.xlu0 %1062
        %vm1065 = vcmask 1043968
        %1066 = vst.msk [vmem:[%s152] sm:$0xf] %vm1065, %v1063
        %s1067 = scalar_lea.vmem %s134, 32 [#allocation2]
        %v1068 = vld [vmem:[%s1067] sm:$0xff]
        %1070 = vrot.lane.b32.xlu0 %v1068, 120
        %v1071 = vpop.permute.xlu0 %1070
        %v1073 = vcombine.high %v1068, 0.0
        %v1075 = vunpack.c.l.s4 1983009808
        %v1076 = vunpack.c.0.s8 %v1075
        %v1077 = vlaneseq
        %v1078 = vshrl.u32 %v1077, 7
        %v1079 = vsub.s32 %v1076, %v1078
        %v1080 = vrot.slane %v1068, %v1079
        %v1082 = vunpack.c.l.s4 1983009808
        %v1083 = vunpack.c.0.s8 %v1082
        %v1084 = vlaneseq
        %v1085 = vshrl.u32 %v1084, 7
        %v1086 = vsub.s32 %v1083, %v1085
        %v1087 = vrot.slane %v1073, %v1086
        %v1088 = vcombine.high %v1071, 0.0
        %v1090 = vunpack.c.l.s4 1983009808
        %v1091 = vunpack.c.0.s8 %v1090
        %v1092 = vlaneseq
        %v1093 = vshrl.u32 %v1092, 7
        %v1094 = vsub.s32 %v1091, %v1093
        %v1095 = vrot.slane %v1071, %v1094
        %v1097 = vunpack.c.l.s4 1983009808
        %v1098 = vunpack.c.0.s8 %v1097
        %v1099 = vlaneseq
        %v1100 = vshrl.u32 %v1099, 7
        %v1101 = vsub.s32 %v1098, %v1100
        %v1102 = vrot.slane %v1088, %v1101
        %v1103 = vcombine.low %v1080, %v1095
        %v1104 = vcombine.high %v1080, %v1095
        %v1106 = vunpack.c.l.s4 1934713408
        %v1107 = vunpack.c.0.s8 %v1106
        %v1108 = vlaneseq
        %v1109 = vshrl.u32 %v1108, 7
        %v1110 = vsub.s32 %v1107, %v1109
        %v1111 = vrot.slane %v1103, %v1110
        %v1113 = vunpack.c.l.s4 1934713408
        %v1114 = vunpack.c.0.s8 %v1113
        %v1115 = vlaneseq
        %v1116 = vshrl.u32 %v1115, 7
        %v1117 = vsub.s32 %v1114, %v1116
        %v1118 = vrot.slane %v1104, %v1117
        %v1119 = vcombine.low %v1087, %v1102
        %v1120 = vcombine.high %v1087, %v1102
        %v1122 = vunpack.c.l.s4 1934713408
        %v1123 = vunpack.c.0.s8 %v1122
        %v1124 = vlaneseq
        %v1125 = vshrl.u32 %v1124, 7
        %v1126 = vsub.s32 %v1123, %v1125
        %v1127 = vrot.slane %v1119, %v1126
        %v1129 = vunpack.c.l.s4 1934713408
        %v1130 = vunpack.c.0.s8 %v1129
        %v1131 = vlaneseq
        %v1132 = vshrl.u32 %v1131, 7
        %v1133 = vsub.s32 %v1130, %v1132
        %v1134 = vrot.slane %v1120, %v1133
        %v1135 = vcombine.high %v1111, 0.0
        %v1136 = vcombine.high %v1118, 0.0
        %v1137 = vcombine.high %v1127, 0.0
        %v1138 = vcombine.high %v1134, 0.0
        %v1139 = vcombine.low %v1111, %v1118
        %v1141 = vunpack.c.l.s4 1983009808
        %v1142 = vunpack.c.0.s8 %v1141
        %v1143 = vlaneseq
        %v1144 = vshrl.u32 %v1143, 7
        %v1145 = vsub.s32 %v1142, %v1144
        %v1146 = vrot.slane %v1139, %v1145
        %v1147 = vcombine.low %v1135, %v1136
        %v1149 = vunpack.c.l.s4 1983009808
        %v1150 = vunpack.c.0.s8 %v1149
        %v1151 = vlaneseq
        %v1152 = vshrl.u32 %v1151, 7
        %v1153 = vsub.s32 %v1150, %v1152
        %v1154 = vrot.slane %v1147, %v1153
        %v1155 = vcombine.low %v1127, %v1134
        %v1157 = vunpack.c.l.s4 1983009808
        %v1158 = vunpack.c.0.s8 %v1157
        %v1159 = vlaneseq
        %v1160 = vshrl.u32 %v1159, 7
        %v1161 = vsub.s32 %v1158, %v1160
        %v1162 = vrot.slane %v1155, %v1161
        %v1163 = vcombine.low %v1137, %v1138
        %v1165 = vunpack.c.l.s4 1983009808
        %v1166 = vunpack.c.0.s8 %v1165
        %v1167 = vlaneseq
        %v1168 = vshrl.u32 %v1167, 7
        %v1169 = vsub.s32 %v1166, %v1168
        %v1170 = vrot.slane %v1163, %v1169
        %v1171 = vcombine.low %v1146, %v1154
        %v1173 = vunpack.c.l.s4 1934713408
        %v1174 = vunpack.c.0.s8 %v1173
        %v1175 = vlaneseq
        %v1176 = vshrl.u32 %v1175, 7
        %v1177 = vsub.s32 %v1174, %v1176
        %v1178 = vrot.slane %v1171, %v1177
        %v1179 = vcombine.low %v1162, %v1170
        %v1181 = vunpack.c.l.s4 1934713408
        %v1182 = vunpack.c.0.s8 %v1181
        %v1183 = vlaneseq
        %v1184 = vshrl.u32 %v1183, 7
        %v1185 = vsub.s32 %v1182, %v1184
        %v1186 = vrot.slane %v1179, %v1185
        %v1187 = vcombine.low %v1178, %v1186
        %v1188 = vcombine.high %v1178, %v1186
        %v1189 = vcombine.high %v1187, 0.0
        %v1191 = vunpack.c.l.s4 1983009808
        %v1192 = vunpack.c.0.s8 %v1191
        %v1193 = vlaneseq
        %v1194 = vshrl.u32 %v1193, 7
        %v1195 = vsub.s32 %v1192, %v1194
        %v1196 = vrot.slane %v1187, %v1195
        %v1198 = vunpack.c.l.s4 1983009808
        %v1199 = vunpack.c.0.s8 %v1198
        %v1200 = vlaneseq
        %v1201 = vshrl.u32 %v1200, 7
        %v1202 = vsub.s32 %v1199, %v1201
        %v1203 = vrot.slane %v1189, %v1202
        %v1204 = vcombine.high %v1188, 0.0
        %v1206 = vunpack.c.l.s4 1983009808
        %v1207 = vunpack.c.0.s8 %v1206
        %v1208 = vlaneseq
        %v1209 = vshrl.u32 %v1208, 7
        %v1210 = vsub.s32 %v1207, %v1209
        %v1211 = vrot.slane %v1188, %v1210
        %v1213 = vunpack.c.l.s4 1983009808
        %v1214 = vunpack.c.0.s8 %v1213
        %v1215 = vlaneseq
        %v1216 = vshrl.u32 %v1215, 7
        %v1217 = vsub.s32 %v1214, %v1216
        %v1218 = vrot.slane %v1204, %v1217
        %v1219 = vcombine.low %v1196, %v1211
        %v1220 = vcombine.high %v1196, %v1211
        %v1222 = vunpack.c.l.s4 1934713408
        %v1223 = vunpack.c.0.s8 %v1222
        %v1224 = vlaneseq
        %v1225 = vshrl.u32 %v1224, 7
        %v1226 = vsub.s32 %v1223, %v1225
        %v1227 = vrot.slane %v1219, %v1226
        %v1229 = vunpack.c.l.s4 1934713408
        %v1230 = vunpack.c.0.s8 %v1229
        %v1231 = vlaneseq
        %v1232 = vshrl.u32 %v1231, 7
        %v1233 = vsub.s32 %v1230, %v1232
        %v1234 = vrot.slane %v1220, %v1233
        %v1235 = vcombine.low %v1203, %v1218
        %v1236 = vcombine.high %v1203, %v1218
        %v1238 = vunpack.c.l.s4 1934713408
        %v1239 = vunpack.c.0.s8 %v1238
        %v1240 = vlaneseq
        %v1241 = vshrl.u32 %v1240, 7
        %v1242 = vsub.s32 %v1239, %v1241
        %v1243 = vrot.slane %v1235, %v1242
        %v1245 = vunpack.c.l.s4 1934713408
        %v1246 = vunpack.c.0.s8 %v1245
        %v1247 = vlaneseq
        %v1248 = vshrl.u32 %v1247, 7
        %v1249 = vsub.s32 %v1246, %v1248
        %v1250 = vrot.slane %v1236, %v1249
        %v1251 = vcombine.high %v1227, 0.0
        %v1252 = vcombine.high %v1234, 0.0
        %v1253 = vcombine.high %v1243, 0.0
        %v1254 = vcombine.high %v1250, 0.0
        %1256 = vrot.lane.b32.xlu0 %v1251, 8
        %v1257 = vpop.permute.xlu0 %1256
        %1260 = vrot.lane.b32.xlu0 %v1234, 16
        %v1261 = vpop.permute.xlu0 %1260
        %1264 = vrot.lane.b32.xlu0 %v1252, 24
        %v1265 = vpop.permute.xlu0 %1264
        %1268 = vrot.lane.b32.xlu0 %v1243, 32
        %v1269 = vpop.permute.xlu0 %1268
        %1272 = vrot.lane.b32.xlu0 %v1253, 40
        %v1273 = vpop.permute.xlu0 %1272
        %1276 = vrot.lane.b32.xlu0 %v1250, 48
        %v1277 = vpop.permute.xlu0 %1276
        %1280 = vrot.lane.b32.xlu0 %v1254, 56
        %v1281 = vpop.permute.xlu0 %1280
        %v1283 = vsel %vm369, %v1227, %v1257
        %v1284 = vsel %vm371, %v1283, %v1261
        %v1285 = vsel %vm373, %v1284, %v1265
        %v1286 = vsel %vm375, %v1285, %v1269
        %v1287 = vsel %vm377, %v1286, %v1273
        %v1288 = vsel %vm379, %v1287, %v1277
        %v1289 = vsel %vm381, %v1288, %v1281
        %v1290 = vld [vmem:[%s1067 + $0x8] sm:$0xff]
        %1292 = vrot.lane.b32.xlu0 %v1290, 120
        %v1293 = vpop.permute.xlu0 %1292
        %v1295 = vcombine.high %v1290, 0.0
        %v1297 = vunpack.c.l.s4 1983009808
        %v1298 = vunpack.c.0.s8 %v1297
        %v1299 = vlaneseq
        %v1300 = vshrl.u32 %v1299, 7
        %v1301 = vsub.s32 %v1298, %v1300
        %v1302 = vrot.slane %v1290, %v1301
        %v1304 = vunpack.c.l.s4 1983009808
        %v1305 = vunpack.c.0.s8 %v1304
        %v1306 = vlaneseq
        %v1307 = vshrl.u32 %v1306, 7
        %v1308 = vsub.s32 %v1305, %v1307
        %v1309 = vrot.slane %v1295, %v1308
        %v1310 = vcombine.high %v1293, 0.0
        %v1312 = vunpack.c.l.s4 1983009808
        %v1313 = vunpack.c.0.s8 %v1312
        %v1314 = vlaneseq
        %v1315 = vshrl.u32 %v1314, 7
        %v1316 = vsub.s32 %v1313, %v1315
        %v1317 = vrot.slane %v1293, %v1316
        %v1319 = vunpack.c.l.s4 1983009808
        %v1320 = vunpack.c.0.s8 %v1319
        %v1321 = vlaneseq
        %v1322 = vshrl.u32 %v1321, 7
        %v1323 = vsub.s32 %v1320, %v1322
        %v1324 = vrot.slane %v1310, %v1323
        %v1325 = vcombine.low %v1302, %v1317
        %v1326 = vcombine.high %v1302, %v1317
        %v1328 = vunpack.c.l.s4 1934713408
        %v1329 = vunpack.c.0.s8 %v1328
        %v1330 = vlaneseq
        %v1331 = vshrl.u32 %v1330, 7
        %v1332 = vsub.s32 %v1329, %v1331
        %v1333 = vrot.slane %v1325, %v1332
        %v1335 = vunpack.c.l.s4 1934713408
        %v1336 = vunpack.c.0.s8 %v1335
        %v1337 = vlaneseq
        %v1338 = vshrl.u32 %v1337, 7
        %v1339 = vsub.s32 %v1336, %v1338
        %v1340 = vrot.slane %v1326, %v1339
        %v1341 = vcombine.low %v1309, %v1324
        %v1342 = vcombine.high %v1309, %v1324
        %v1344 = vunpack.c.l.s4 1934713408
        %v1345 = vunpack.c.0.s8 %v1344
        %v1346 = vlaneseq
        %v1347 = vshrl.u32 %v1346, 7
        %v1348 = vsub.s32 %v1345, %v1347
        %v1349 = vrot.slane %v1341, %v1348
        %v1351 = vunpack.c.l.s4 1934713408
        %v1352 = vunpack.c.0.s8 %v1351
        %v1353 = vlaneseq
        %v1354 = vshrl.u32 %v1353, 7
        %v1355 = vsub.s32 %v1352, %v1354
        %v1356 = vrot.slane %v1342, %v1355
        %v1357 = vcombine.high %v1333, 0.0
        %v1358 = vcombine.high %v1340, 0.0
        %v1359 = vcombine.high %v1349, 0.0
        %v1360 = vcombine.high %v1356, 0.0
        %v1361 = vcombine.low %v1333, %v1340
        %v1363 = vunpack.c.l.s4 1983009808
        %v1364 = vunpack.c.0.s8 %v1363
        %v1365 = vlaneseq
        %v1366 = vshrl.u32 %v1365, 7
        %v1367 = vsub.s32 %v1364, %v1366
        %v1368 = vrot.slane %v1361, %v1367
        %v1369 = vcombine.low %v1357, %v1358
        %v1371 = vunpack.c.l.s4 1983009808
        %v1372 = vunpack.c.0.s8 %v1371
        %v1373 = vlaneseq
        %v1374 = vshrl.u32 %v1373, 7
        %v1375 = vsub.s32 %v1372, %v1374
        %v1376 = vrot.slane %v1369, %v1375
        %v1377 = vcombine.low %v1349, %v1356
        %v1379 = vunpack.c.l.s4 1983009808
        %v1380 = vunpack.c.0.s8 %v1379
        %v1381 = vlaneseq
        %v1382 = vshrl.u32 %v1381, 7
        %v1383 = vsub.s32 %v1380, %v1382
        %v1384 = vrot.slane %v1377, %v1383
        %v1385 = vcombine.low %v1359, %v1360
        %v1387 = vunpack.c.l.s4 1983009808
        %v1388 = vunpack.c.0.s8 %v1387
        %v1389 = vlaneseq
        %v1390 = vshrl.u32 %v1389, 7
        %v1391 = vsub.s32 %v1388, %v1390
        %v1392 = vrot.slane %v1385, %v1391
        %v1393 = vcombine.low %v1368, %v1376
        %v1395 = vunpack.c.l.s4 1934713408
        %v1396 = vunpack.c.0.s8 %v1395
        %v1397 = vlaneseq
        %v1398 = vshrl.u32 %v1397, 7
        %v1399 = vsub.s32 %v1396, %v1398
        %v1400 = vrot.slane %v1393, %v1399
        %v1401 = vcombine.low %v1384, %v1392
        %v1403 = vunpack.c.l.s4 1934713408
        %v1404 = vunpack.c.0.s8 %v1403
        %v1405 = vlaneseq
        %v1406 = vshrl.u32 %v1405, 7
        %v1407 = vsub.s32 %v1404, %v1406
        %v1408 = vrot.slane %v1401, %v1407
        %v1409 = vcombine.low %v1400, %v1408
        %v1410 = vcombine.high %v1400, %v1408
        %v1411 = vcombine.high %v1409, 0.0
        %v1413 = vunpack.c.l.s4 1983009808
        %v1414 = vunpack.c.0.s8 %v1413
        %v1415 = vlaneseq
        %v1416 = vshrl.u32 %v1415, 7
        %v1417 = vsub.s32 %v1414, %v1416
        %v1418 = vrot.slane %v1409, %v1417
        %v1420 = vunpack.c.l.s4 1983009808
        %v1421 = vunpack.c.0.s8 %v1420
        %v1422 = vlaneseq
        %v1423 = vshrl.u32 %v1422, 7
        %v1424 = vsub.s32 %v1421, %v1423
        %v1425 = vrot.slane %v1411, %v1424
        %v1426 = vcombine.high %v1410, 0.0
        %v1428 = vunpack.c.l.s4 1983009808
        %v1429 = vunpack.c.0.s8 %v1428
        %v1430 = vlaneseq
        %v1431 = vshrl.u32 %v1430, 7
        %v1432 = vsub.s32 %v1429, %v1431
        %v1433 = vrot.slane %v1410, %v1432
        %v1435 = vunpack.c.l.s4 1983009808
        %v1436 = vunpack.c.0.s8 %v1435
        %v1437 = vlaneseq
        %v1438 = vshrl.u32 %v1437, 7
        %v1439 = vsub.s32 %v1436, %v1438
        %v1440 = vrot.slane %v1426, %v1439
        %v1441 = vcombine.low %v1418, %v1433
        %v1442 = vcombine.high %v1418, %v1433
        %v1444 = vunpack.c.l.s4 1934713408
        %v1445 = vunpack.c.0.s8 %v1444
        %v1446 = vlaneseq
        %v1447 = vshrl.u32 %v1446, 7
        %v1448 = vsub.s32 %v1445, %v1447
        %v1449 = vrot.slane %v1441, %v1448
        %v1451 = vunpack.c.l.s4 1934713408
        %v1452 = vunpack.c.0.s8 %v1451
        %v1453 = vlaneseq
        %v1454 = vshrl.u32 %v1453, 7
        %v1455 = vsub.s32 %v1452, %v1454
        %v1456 = vrot.slane %v1442, %v1455
        %v1457 = vcombine.low %v1425, %v1440
        %v1458 = vcombine.high %v1425, %v1440
        %v1460 = vunpack.c.l.s4 1934713408
        %v1461 = vunpack.c.0.s8 %v1460
        %v1462 = vlaneseq
        %v1463 = vshrl.u32 %v1462, 7
        %v1464 = vsub.s32 %v1461, %v1463
        %v1465 = vrot.slane %v1457, %v1464
        %v1467 = vunpack.c.l.s4 1934713408
        %v1468 = vunpack.c.0.s8 %v1467
        %v1469 = vlaneseq
        %v1470 = vshrl.u32 %v1469, 7
        %v1471 = vsub.s32 %v1468, %v1470
        %v1472 = vrot.slane %v1458, %v1471
        %v1473 = vcombine.high %v1449, 0.0
        %v1474 = vcombine.high %v1456, 0.0
        %v1475 = vcombine.high %v1465, 0.0
        %v1476 = vcombine.high %v1472, 0.0
        %1478 = vrot.lane.b32.xlu0 %v1473, 8
        %v1479 = vpop.permute.xlu0 %1478
        %1482 = vrot.lane.b32.xlu0 %v1456, 16
        %v1483 = vpop.permute.xlu0 %1482
        %1486 = vrot.lane.b32.xlu0 %v1474, 24
        %v1487 = vpop.permute.xlu0 %1486
        %1490 = vrot.lane.b32.xlu0 %v1465, 32
        %v1491 = vpop.permute.xlu0 %1490
        %1494 = vrot.lane.b32.xlu0 %v1475, 40
        %v1495 = vpop.permute.xlu0 %1494
        %1498 = vrot.lane.b32.xlu0 %v1472, 48
        %v1499 = vpop.permute.xlu0 %1498
        %1502 = vrot.lane.b32.xlu0 %v1476, 56
        %v1503 = vpop.permute.xlu0 %1502
        %v1505 = vsel %vm369, %v1449, %v1479
        %v1506 = vsel %vm371, %v1505, %v1483
        %v1507 = vsel %vm373, %v1506, %v1487
        %v1508 = vsel %vm375, %v1507, %v1491
        %v1509 = vsel %vm377, %v1508, %v1495
        %v1510 = vsel %vm379, %v1509, %v1499
        %v1511 = vsel %vm381, %v1510, %v1503
        %v1513 = vrot.slane %v1511, 6
        %v1515 = vsel %vm608, %v1289, %v1513
        %1516 = vst.msk [vmem:[%s152 + $0x4] sm:$0xf] %vm610, %v1515
        %s1517 = scalar_lea.vmem %s134, 48 [#allocation2]
        %v1518 = vld [vmem:[%s1517] sm:$0xff]
        %1520 = vrot.lane.b32.xlu0 %v1518, 120
        %v1521 = vpop.permute.xlu0 %1520
        %v1523 = vcombine.high %v1518, 0.0
        %v1525 = vunpack.c.l.s4 1983009808
        %v1526 = vunpack.c.0.s8 %v1525
        %v1527 = vlaneseq
        %v1528 = vshrl.u32 %v1527, 7
        %v1529 = vsub.s32 %v1526, %v1528
        %v1530 = vrot.slane %v1518, %v1529
        %v1532 = vunpack.c.l.s4 1983009808
        %v1533 = vunpack.c.0.s8 %v1532
        %v1534 = vlaneseq
        %v1535 = vshrl.u32 %v1534, 7
        %v1536 = vsub.s32 %v1533, %v1535
        %v1537 = vrot.slane %v1523, %v1536
        %v1538 = vcombine.high %v1521, 0.0
        %v1540 = vunpack.c.l.s4 1983009808
        %v1541 = vunpack.c.0.s8 %v1540
        %v1542 = vlaneseq
        %v1543 = vshrl.u32 %v1542, 7
        %v1544 = vsub.s32 %v1541, %v1543
        %v1545 = vrot.slane %v1521, %v1544
        %v1547 = vunpack.c.l.s4 1983009808
        %v1548 = vunpack.c.0.s8 %v1547
        %v1549 = vlaneseq
        %v1550 = vshrl.u32 %v1549, 7
        %v1551 = vsub.s32 %v1548, %v1550
        %v1552 = vrot.slane %v1538, %v1551
        %v1553 = vcombine.low %v1530, %v1545
        %v1554 = vcombine.high %v1530, %v1545
        %v1556 = vunpack.c.l.s4 1934713408
        %v1557 = vunpack.c.0.s8 %v1556
        %v1558 = vlaneseq
        %v1559 = vshrl.u32 %v1558, 7
        %v1560 = vsub.s32 %v1557, %v1559
        %v1561 = vrot.slane %v1553, %v1560
        %v1563 = vunpack.c.l.s4 1934713408
        %v1564 = vunpack.c.0.s8 %v1563
        %v1565 = vlaneseq
        %v1566 = vshrl.u32 %v1565, 7
        %v1567 = vsub.s32 %v1564, %v1566
        %v1568 = vrot.slane %v1554, %v1567
        %v1569 = vcombine.low %v1537, %v1552
        %v1570 = vcombine.high %v1537, %v1552
        %v1572 = vunpack.c.l.s4 1934713408
        %v1573 = vunpack.c.0.s8 %v1572
        %v1574 = vlaneseq
        %v1575 = vshrl.u32 %v1574, 7
        %v1576 = vsub.s32 %v1573, %v1575
        %v1577 = vrot.slane %v1569, %v1576
        %v1579 = vunpack.c.l.s4 1934713408
        %v1580 = vunpack.c.0.s8 %v1579
        %v1581 = vlaneseq
        %v1582 = vshrl.u32 %v1581, 7
        %v1583 = vsub.s32 %v1580, %v1582
        %v1584 = vrot.slane %v1570, %v1583
        %v1585 = vcombine.high %v1561, 0.0
        %v1586 = vcombine.high %v1568, 0.0
        %v1587 = vcombine.high %v1577, 0.0
        %v1588 = vcombine.high %v1584, 0.0
        %v1589 = vcombine.low %v1561, %v1568
        %v1591 = vunpack.c.l.s4 1983009808
        %v1592 = vunpack.c.0.s8 %v1591
        %v1593 = vlaneseq
        %v1594 = vshrl.u32 %v1593, 7
        %v1595 = vsub.s32 %v1592, %v1594
        %v1596 = vrot.slane %v1589, %v1595
        %v1597 = vcombine.low %v1585, %v1586
        %v1599 = vunpack.c.l.s4 1983009808
        %v1600 = vunpack.c.0.s8 %v1599
        %v1601 = vlaneseq
        %v1602 = vshrl.u32 %v1601, 7
        %v1603 = vsub.s32 %v1600, %v1602
        %v1604 = vrot.slane %v1597, %v1603
        %v1605 = vcombine.low %v1577, %v1584
        %v1607 = vunpack.c.l.s4 1983009808
        %v1608 = vunpack.c.0.s8 %v1607
        %v1609 = vlaneseq
        %v1610 = vshrl.u32 %v1609, 7
        %v1611 = vsub.s32 %v1608, %v1610
        %v1612 = vrot.slane %v1605, %v1611
        %v1613 = vcombine.low %v1587, %v1588
        %v1615 = vunpack.c.l.s4 1983009808
        %v1616 = vunpack.c.0.s8 %v1615
        %v1617 = vlaneseq
        %v1618 = vshrl.u32 %v1617, 7
        %v1619 = vsub.s32 %v1616, %v1618
        %v1620 = vrot.slane %v1613, %v1619
        %v1621 = vcombine.low %v1596, %v1604
        %v1623 = vunpack.c.l.s4 1934713408
        %v1624 = vunpack.c.0.s8 %v1623
        %v1625 = vlaneseq
        %v1626 = vshrl.u32 %v1625, 7
        %v1627 = vsub.s32 %v1624, %v1626
        %v1628 = vrot.slane %v1621, %v1627
        %v1629 = vcombine.low %v1612, %v1620
        %v1631 = vunpack.c.l.s4 1934713408
        %v1632 = vunpack.c.0.s8 %v1631
        %v1633 = vlaneseq
        %v1634 = vshrl.u32 %v1633, 7
        %v1635 = vsub.s32 %v1632, %v1634
        %v1636 = vrot.slane %v1629, %v1635
        %v1637 = vcombine.low %v1628, %v1636
        %v1638 = vcombine.high %v1628, %v1636
        %v1639 = vcombine.high %v1637, 0.0
        %v1641 = vunpack.c.l.s4 1983009808
        %v1642 = vunpack.c.0.s8 %v1641
        %v1643 = vlaneseq
        %v1644 = vshrl.u32 %v1643, 7
        %v1645 = vsub.s32 %v1642, %v1644
        %v1646 = vrot.slane %v1637, %v1645
        %v1648 = vunpack.c.l.s4 1983009808
        %v1649 = vunpack.c.0.s8 %v1648
        %v1650 = vlaneseq
        %v1651 = vshrl.u32 %v1650, 7
        %v1652 = vsub.s32 %v1649, %v1651
        %v1653 = vrot.slane %v1639, %v1652
        %v1654 = vcombine.high %v1638, 0.0
        %v1656 = vunpack.c.l.s4 1983009808
        %v1657 = vunpack.c.0.s8 %v1656
        %v1658 = vlaneseq
        %v1659 = vshrl.u32 %v1658, 7
        %v1660 = vsub.s32 %v1657, %v1659
        %v1661 = vrot.slane %v1638, %v1660
        %v1663 = vunpack.c.l.s4 1983009808
        %v1664 = vunpack.c.0.s8 %v1663
        %v1665 = vlaneseq
        %v1666 = vshrl.u32 %v1665, 7
        %v1667 = vsub.s32 %v1664, %v1666
        %v1668 = vrot.slane %v1654, %v1667
        %v1669 = vcombine.low %v1646, %v1661
        %v1670 = vcombine.high %v1646, %v1661
        %v1672 = vunpack.c.l.s4 1934713408
        %v1673 = vunpack.c.0.s8 %v1672
        %v1674 = vlaneseq
        %v1675 = vshrl.u32 %v1674, 7
        %v1676 = vsub.s32 %v1673, %v1675
        %v1677 = vrot.slane %v1669, %v1676
        %v1679 = vunpack.c.l.s4 1934713408
        %v1680 = vunpack.c.0.s8 %v1679
        %v1681 = vlaneseq
        %v1682 = vshrl.u32 %v1681, 7
        %v1683 = vsub.s32 %v1680, %v1682
        %v1684 = vrot.slane %v1670, %v1683
        %v1685 = vcombine.low %v1653, %v1668
        %v1686 = vcombine.high %v1653, %v1668
        %v1688 = vunpack.c.l.s4 1934713408
        %v1689 = vunpack.c.0.s8 %v1688
        %v1690 = vlaneseq
        %v1691 = vshrl.u32 %v1690, 7
        %v1692 = vsub.s32 %v1689, %v1691
        %v1693 = vrot.slane %v1685, %v1692
        %v1695 = vunpack.c.l.s4 1934713408
        %v1696 = vunpack.c.0.s8 %v1695
        %v1697 = vlaneseq
        %v1698 = vshrl.u32 %v1697, 7
        %v1699 = vsub.s32 %v1696, %v1698
        %v1700 = vrot.slane %v1686, %v1699
        %v1701 = vcombine.high %v1677, 0.0
        %v1702 = vcombine.high %v1684, 0.0
        %v1703 = vcombine.high %v1693, 0.0
        %v1704 = vcombine.high %v1700, 0.0
        %1706 = vrot.lane.b32.xlu0 %v1701, 8
        %v1707 = vpop.permute.xlu0 %1706
        %1710 = vrot.lane.b32.xlu0 %v1684, 16
        %v1711 = vpop.permute.xlu0 %1710
        %1714 = vrot.lane.b32.xlu0 %v1702, 24
        %v1715 = vpop.permute.xlu0 %1714
        %1718 = vrot.lane.b32.xlu0 %v1693, 32
        %v1719 = vpop.permute.xlu0 %1718
        %1722 = vrot.lane.b32.xlu0 %v1703, 40
        %v1723 = vpop.permute.xlu0 %1722
        %1726 = vrot.lane.b32.xlu0 %v1700, 48
        %v1727 = vpop.permute.xlu0 %1726
        %1730 = vrot.lane.b32.xlu0 %v1704, 56
        %v1731 = vpop.permute.xlu0 %1730
        %v1733 = vsel %vm369, %v1677, %v1707
        %v1734 = vsel %vm371, %v1733, %v1711
        %v1735 = vsel %vm373, %v1734, %v1715
        %v1736 = vsel %vm375, %v1735, %v1719
        %v1737 = vsel %vm377, %v1736, %v1723
        %v1738 = vsel %vm379, %v1737, %v1727
        %v1739 = vsel %vm381, %v1738, %v1731
        %v1740 = vld [vmem:[%s1517 + $0x8] sm:$0xff]
        %1742 = vrot.lane.b32.xlu0 %v1740, 120
        %v1743 = vpop.permute.xlu0 %1742
        %v1745 = vcombine.high %v1740, 0.0
        %v1747 = vunpack.c.l.s4 1983009808
        %v1748 = vunpack.c.0.s8 %v1747
        %v1749 = vlaneseq
        %v1750 = vshrl.u32 %v1749, 7
        %v1751 = vsub.s32 %v1748, %v1750
        %v1752 = vrot.slane %v1740, %v1751
        %v1754 = vunpack.c.l.s4 1983009808
        %v1755 = vunpack.c.0.s8 %v1754
        %v1756 = vlaneseq
        %v1757 = vshrl.u32 %v1756, 7
        %v1758 = vsub.s32 %v1755, %v1757
        %v1759 = vrot.slane %v1745, %v1758
        %v1760 = vcombine.high %v1743, 0.0
        %v1762 = vunpack.c.l.s4 1983009808
        %v1763 = vunpack.c.0.s8 %v1762
        %v1764 = vlaneseq
        %v1765 = vshrl.u32 %v1764, 7
        %v1766 = vsub.s32 %v1763, %v1765
        %v1767 = vrot.slane %v1743, %v1766
        %v1769 = vunpack.c.l.s4 1983009808
        %v1770 = vunpack.c.0.s8 %v1769
        %v1771 = vlaneseq
        %v1772 = vshrl.u32 %v1771, 7
        %v1773 = vsub.s32 %v1770, %v1772
        %v1774 = vrot.slane %v1760, %v1773
        %v1775 = vcombine.low %v1752, %v1767
        %v1776 = vcombine.high %v1752, %v1767
        %v1778 = vunpack.c.l.s4 1934713408
        %v1779 = vunpack.c.0.s8 %v1778
        %v1780 = vlaneseq
        %v1781 = vshrl.u32 %v1780, 7
        %v1782 = vsub.s32 %v1779, %v1781
        %v1783 = vrot.slane %v1775, %v1782
        %v1785 = vunpack.c.l.s4 1934713408
        %v1786 = vunpack.c.0.s8 %v1785
        %v1787 = vlaneseq
        %v1788 = vshrl.u32 %v1787, 7
        %v1789 = vsub.s32 %v1786, %v1788
        %v1790 = vrot.slane %v1776, %v1789
        %v1791 = vcombine.low %v1759, %v1774
        %v1792 = vcombine.high %v1759, %v1774
        %v1794 = vunpack.c.l.s4 1934713408
        %v1795 = vunpack.c.0.s8 %v1794
        %v1796 = vlaneseq
        %v1797 = vshrl.u32 %v1796, 7
        %v1798 = vsub.s32 %v1795, %v1797
        %v1799 = vrot.slane %v1791, %v1798
        %v1801 = vunpack.c.l.s4 1934713408
        %v1802 = vunpack.c.0.s8 %v1801
        %v1803 = vlaneseq
        %v1804 = vshrl.u32 %v1803, 7
        %v1805 = vsub.s32 %v1802, %v1804
        %v1806 = vrot.slane %v1792, %v1805
        %v1807 = vcombine.high %v1783, 0.0
        %v1808 = vcombine.high %v1790, 0.0
        %v1809 = vcombine.high %v1799, 0.0
        %v1810 = vcombine.high %v1806, 0.0
        %v1811 = vcombine.low %v1783, %v1790
        %v1813 = vunpack.c.l.s4 1983009808
        %v1814 = vunpack.c.0.s8 %v1813
        %v1815 = vlaneseq
        %v1816 = vshrl.u32 %v1815, 7
        %v1817 = vsub.s32 %v1814, %v1816
        %v1818 = vrot.slane %v1811, %v1817
        %v1819 = vcombine.low %v1807, %v1808
        %v1821 = vunpack.c.l.s4 1983009808
        %v1822 = vunpack.c.0.s8 %v1821
        %v1823 = vlaneseq
        %v1824 = vshrl.u32 %v1823, 7
        %v1825 = vsub.s32 %v1822, %v1824
        %v1826 = vrot.slane %v1819, %v1825
        %v1827 = vcombine.low %v1799, %v1806
        %v1829 = vunpack.c.l.s4 1983009808
        %v1830 = vunpack.c.0.s8 %v1829
        %v1831 = vlaneseq
        %v1832 = vshrl.u32 %v1831, 7
        %v1833 = vsub.s32 %v1830, %v1832
        %v1834 = vrot.slane %v1827, %v1833
        %v1835 = vcombine.low %v1809, %v1810
        %v1837 = vunpack.c.l.s4 1983009808
        %v1838 = vunpack.c.0.s8 %v1837
        %v1839 = vlaneseq
        %v1840 = vshrl.u32 %v1839, 7
        %v1841 = vsub.s32 %v1838, %v1840
        %v1842 = vrot.slane %v1835, %v1841
        %v1843 = vcombine.low %v1818, %v1826
        %v1845 = vunpack.c.l.s4 1934713408
        %v1846 = vunpack.c.0.s8 %v1845
        %v1847 = vlaneseq
        %v1848 = vshrl.u32 %v1847, 7
        %v1849 = vsub.s32 %v1846, %v1848
        %v1850 = vrot.slane %v1843, %v1849
        %v1851 = vcombine.low %v1834, %v1842
        %v1853 = vunpack.c.l.s4 1934713408
        %v1854 = vunpack.c.0.s8 %v1853
        %v1855 = vlaneseq
        %v1856 = vshrl.u32 %v1855, 7
        %v1857 = vsub.s32 %v1854, %v1856
        %v1858 = vrot.slane %v1851, %v1857
        %v1859 = vcombine.low %v1850, %v1858
        %v1860 = vcombine.high %v1850, %v1858
        %v1861 = vcombine.high %v1859, 0.0
        %v1863 = vunpack.c.l.s4 1983009808
        %v1864 = vunpack.c.0.s8 %v1863
        %v1865 = vlaneseq
        %v1866 = vshrl.u32 %v1865, 7
        %v1867 = vsub.s32 %v1864, %v1866
        %v1868 = vrot.slane %v1859, %v1867
        %v1870 = vunpack.c.l.s4 1983009808
        %v1871 = vunpack.c.0.s8 %v1870
        %v1872 = vlaneseq
        %v1873 = vshrl.u32 %v1872, 7
        %v1874 = vsub.s32 %v1871, %v1873
        %v1875 = vrot.slane %v1861, %v1874
        %v1876 = vcombine.high %v1860, 0.0
        %v1878 = vunpack.c.l.s4 1983009808
        %v1879 = vunpack.c.0.s8 %v1878
        %v1880 = vlaneseq
        %v1881 = vshrl.u32 %v1880, 7
        %v1882 = vsub.s32 %v1879, %v1881
        %v1883 = vrot.slane %v1860, %v1882
        %v1885 = vunpack.c.l.s4 1983009808
        %v1886 = vunpack.c.0.s8 %v1885
        %v1887 = vlaneseq
        %v1888 = vshrl.u32 %v1887, 7
        %v1889 = vsub.s32 %v1886, %v1888
        %v1890 = vrot.slane %v1876, %v1889
        %v1891 = vcombine.low %v1868, %v1883
        %v1892 = vcombine.high %v1868, %v1883
        %v1894 = vunpack.c.l.s4 1934713408
        %v1895 = vunpack.c.0.s8 %v1894
        %v1896 = vlaneseq
        %v1897 = vshrl.u32 %v1896, 7
        %v1898 = vsub.s32 %v1895, %v1897
        %v1899 = vrot.slane %v1891, %v1898
        %v1901 = vunpack.c.l.s4 1934713408
        %v1902 = vunpack.c.0.s8 %v1901
        %v1903 = vlaneseq
        %v1904 = vshrl.u32 %v1903, 7
        %v1905 = vsub.s32 %v1902, %v1904
        %v1906 = vrot.slane %v1892, %v1905
        %v1907 = vcombine.low %v1875, %v1890
        %v1908 = vcombine.high %v1875, %v1890
        %v1910 = vunpack.c.l.s4 1934713408
        %v1911 = vunpack.c.0.s8 %v1910
        %v1912 = vlaneseq
        %v1913 = vshrl.u32 %v1912, 7
        %v1914 = vsub.s32 %v1911, %v1913
        %v1915 = vrot.slane %v1907, %v1914
        %v1917 = vunpack.c.l.s4 1934713408
        %v1918 = vunpack.c.0.s8 %v1917
        %v1919 = vlaneseq
        %v1920 = vshrl.u32 %v1919, 7
        %v1921 = vsub.s32 %v1918, %v1920
        %v1922 = vrot.slane %v1908, %v1921
        %v1923 = vcombine.high %v1899, 0.0
        %v1924 = vcombine.high %v1906, 0.0
        %v1925 = vcombine.high %v1915, 0.0
        %v1926 = vcombine.high %v1922, 0.0
        %1928 = vrot.lane.b32.xlu0 %v1923, 8
        %v1929 = vpop.permute.xlu0 %1928
        %1932 = vrot.lane.b32.xlu0 %v1906, 16
        %v1933 = vpop.permute.xlu0 %1932
        %1936 = vrot.lane.b32.xlu0 %v1924, 24
        %v1937 = vpop.permute.xlu0 %1936
        %1940 = vrot.lane.b32.xlu0 %v1915, 32
        %v1941 = vpop.permute.xlu0 %1940
        %1944 = vrot.lane.b32.xlu0 %v1925, 40
        %v1945 = vpop.permute.xlu0 %1944
        %1948 = vrot.lane.b32.xlu0 %v1922, 48
        %v1949 = vpop.permute.xlu0 %1948
        %1952 = vrot.lane.b32.xlu0 %v1926, 56
        %v1953 = vpop.permute.xlu0 %1952
        %v1955 = vsel %vm369, %v1899, %v1929
        %v1956 = vsel %vm371, %v1955, %v1933
        %v1957 = vsel %vm373, %v1956, %v1937
        %v1958 = vsel %vm375, %v1957, %v1941
        %v1959 = vsel %vm377, %v1958, %v1945
        %v1960 = vsel %vm379, %v1959, %v1949
        %v1961 = vsel %vm381, %v1960, %v1953
        %v1963 = vrot.slane %v1961, 6
        %v1965 = vsel %vm608, %v1739, %v1963
        %1967 = vrot.lane.b32.xlu0 %v1965, 64
        %v1968 = vpop.permute.xlu0 %1967
        %1970 = vst.msk [vmem:[%s152 + $0x4] sm:$0xf] %vm1065, %v1968
        %s1971 = sand.u32 %s68, 1
        %s1972 = scalar_lea.sflag [#allocation4], %s1971
        %s1973 = sand.u32 %s68, 1
        %s1974 = smul.addr %s1973, 8
        %s1975 = scalar_lea.vmem [#allocation5], %s1974
        // Predicated region
        $region29: #{tpu_custom_call.1} parent=23 // pred_check
          %p1976 = pneg %p78
        $region30: #{tpu_custom_call.1} parent=23 // pred_check_branch
          %1978 = sbr.rel (%p1976) target = $region32
        $region31: #{tpu_custom_call.1} parent=23 // pred_region
          %s1980 = ssub.s32 128, 128
          %1981 = vsyncadd %s1972, %s1980
          %s1982 = smul.addr %s23, 2
          %s1983 = smul.addr %s22, 2
          %s1984 = sadd.s32 %s1982, %s1983
          %s1985 = smul.addr %s1984, 64
          %s1986 = scalar_lea.hbm %s1, %s1985
          %s1988 = sshll.u32 %s1975, 4
          %s1989 = int_to_ptr.vmem [resolvable:$true] %s1988
          %1991 = dma.vmem_to_hbm [thread:$0]  %s1989, 128, %s1986, %s1972
        $region32: #{tpu_custom_call.1} parent=23 // pred_fallthru
          _
      $region24: #{tpu_custom_call.1} parent=5 // pred_fallthru
        _
      %p1992 = scmp.le.s32.totalorder 2, %s13
      // Predicated region
      $region33: #{tpu_custom_call.1} parent=5 // pred_check
        %p1993 = pneg %p1992
      $region34: #{tpu_custom_call.1} parent=5 // pred_check_branch
        %1995 = sbr.rel (%p1993) target = $region36
      $region35: #{tpu_custom_call.1} parent=5 // pred_region
        %s1996 = ssub.s32 %s13, 2
        // Predicated region
        $region37: #{tpu_custom_call.1} parent=35 // pred_check
          %p1997 = pneg %p84
        $region38: #{tpu_custom_call.1} parent=35 // pred_check_branch
          %1999 = sbr.rel (%p1997) target = $region40
        $region39: #{tpu_custom_call.1} parent=35 // pred_region
          %s2000 = sand.u32 %s69, 1
          %s2001 = scalar_lea.sflag [#allocation4], %s2000
          %s2002 = sand.u32 %s69, 1
          %s2003 = smul.addr %s2002, 8
          %s2004 = scalar_lea.vmem [#allocation5], %s2003
          %2005 = dma.done %s2001, 128
        $region40: #{tpu_custom_call.1} parent=35 // pred_fallthru
          _
      $region36: #{tpu_custom_call.1} parent=5 // pred_fallthru
        _
    $region6: #{tpu_custom_call.1} parent=1 // loop_footer
      %s17 = sadd.s32 1, %s13
    $region7: #{tpu_custom_call.1} parent=1 // loop_footer_branch
      %12 = sbr.rel target = $region3
    $region8: #{tpu_custom_call.1} parent=1 // loop_exit
      _
    %2006 = vsyncpa [#allocation3], 1
    %s2007 = scalar_lea.sflag [#allocation3], 1
    %2008 = vsyncpa %s2007, 1
    %2009 = vsyncpa [#allocation4], 1
    %s2010 = scalar_lea.sflag [#allocation4], 1
    %2011 = vsyncpa %s2010, 1

</llo_original>
